<compile_context>
chip_gen: v7x
topology: tpu7x:2x2x1
jax: 0.10.0
libtpu: 0.0.40
codegen_flags: <defaults>
</compile_context>

<pallas_src>
import functools

import jax
import jax.numpy as jnp
from jax.experimental import pallas as pl
from jax.experimental.pallas import tpu as pltpu

REGION = 4          # self.region_number
KSIZE = 3           # kernel_size
K2 = KSIZE * KSIZE
LEAK = 0.1          # LeakyReLU slope


def _lrelu(v):
    return jnp.where(v > 0, v, LEAK * v)


def _round_up(n, m):
    return ((n + m - 1) // m) * m


def da_conv_kernel(buf_ref, wall_ref, gb_ref, att_ref, cw_ref, cb_ref,
                   out_ref, slab_ref, acc_ref, *, wp2, margin):
    _, C, T = out_ref.shape
    R = REGION

    # ---- 1. build the 9-tap im2col slab in VMEM from the halo-padded image -
    # buf is the zero-padded image flattened to (C, L) with `margin` zeros on
    # both ends, so every tap is a static lane-shifted slice (no HBM im2col).
    for k in range(K2):
        dy, dx = divmod(k, KSIZE)
        d = (dy - 1) * wp2 + (dx - 1)
        slab_ref[k * C:(k + 1) * C, :] = buf_ref[0, :, pl.ds(margin + d, T)]

    # ---- 2. ONE fused MXU matmul: guide convs (2R rows) + per-channel ------
    #         dynamic 3x3 conv pre-activations (R*C rows)
    acc_ref[...] = jnp.dot(wall_ref[0], slab_ref[...],
                           preferred_element_type=jnp.float32)

    guides = acc_ref[0:2 * R, :] + gb_ref[...]                     # (2R, T)

    def first_max_masks(g):
        # packed one-hot argmax masks (R, T); strict '>' == first-max
        best = g[0:1, :]
        idx = jnp.zeros((1, T), jnp.int32)
        for r in range(1, R):
            cur = g[r:r + 1, :]
            upd = cur > best
            best = jnp.where(upd, cur, best)
            idx = jnp.where(upd, r, idx)
        rows = jax.lax.broadcasted_iota(jnp.int32, (R, T), 0)
        return (rows == idx).astype(jnp.float32)

    masks1 = first_max_masks(guides[0:R, :])                       # (R, T)
    masks2 = first_max_masks(guides[R:2 * R, :])                   # (R, T)

    # ---- 3. branch 1: LeakyReLU + region select, then 1x1 conv -------------
    sel1 = jnp.zeros((C, T), jnp.float32)
    for r in range(R):
        pre = acc_ref[2 * R + r * C:2 * R + (r + 1) * C, :]        # (C, T)
        sel1 = sel1 + _lrelu(pre) * masks1[r:r + 1, :]

    if C <= 8:
        # tiny C: C broadcast FMAs on the VPU beat an underfilled MXU matmul
        cwv = cw_ref[...]
        out1 = cb_ref[...] + sel1[0:1, :] * cwv[:, 0:1]
        for c in range(1, C):
            out1 = out1 + sel1[c:c + 1, :] * cwv[:, c:c + 1]
    else:
        out1 = jnp.dot(cw_ref[...], sel1,
                       preferred_element_type=jnp.float32) + cb_ref[...]

    # ---- 4. branch 2: channel-attention gates region-selected by guide 2 ---
    gate = att_ref[0, 0:C, :] * masks2[0:1, :]
    for r in range(1, R):
        gate = gate + att_ref[0, r * C:(r + 1) * C, :] * masks2[r:r + 1, :]
    xc = slab_ref[4 * C:5 * C, :]                                  # centre tap

    out_ref[0] = out1 + xc * gate                                  # dense store


# ---------------------------------------------------------------------------
# Plain-JAX glue: per-sample dynamic-kernel / attention generation (tiny B x C
# matmuls), fused-weight construction, halo buffer, pallas_call wrapper.
# ---------------------------------------------------------------------------

def _grouped_1x1(y, w2, out_per_group):
    """Grouped 1x1 conv (groups=REGION) on a (B, REGION*in_pg) vector."""
    B = y.shape[0]
    in_pg = w2.shape[1]
    yg = y.reshape(B, REGION, in_pg)
    wg = w2.reshape(REGION, out_per_group, in_pg)
    return jnp.einsum('bgi,goi->bgo', yg, wg).reshape(B, REGION * out_per_group)


def init_params(key, C):
    ks = jax.random.split(key, 10)

    def rnd(k, shape, scale=0.2):
        return scale * jax.random.normal(k, shape, dtype=jnp.float32)

    hidden = REGION * REGION  # 16
    return dict(
        k_w1=rnd(ks[0], (hidden, C)),                                     # Conv1d(C,16,1)
        k_w2=rnd(ks[1], (C * REGION * K2, hidden // REGION)),             # grouped Conv1d
        ca_w1=rnd(ks[2], (hidden, C)),                                    # Conv2d(C,16,1)
        ca_w2=rnd(ks[3], (C * REGION, hidden // REGION)),                 # grouped Conv2d
        conv_w=rnd(ks[4], (C, C)),                                        # default_conv 1x1
        conv_b=rnd(ks[5], (C,)),
        g1_w=rnd(ks[6], (REGION, C, KSIZE, KSIZE)),                       # conv_guide1
        g1_b=rnd(ks[7], (REGION,)),
        g2_w=rnd(ks[8], (REGION, C, KSIZE, KSIZE)),                       # conv_guide2
        g2_b=rnd(ks[9], (REGION,)),
    )


def da_conv_forward(x, deg, p):
    B, C, H, W = x.shape
    HWP = (H + 2) * (W + 2)

    # ---- per-sample dynamic kernels & CA gates (tiny BxC matmuls, JAX glue) -
    y1 = _lrelu(deg @ p['k_w1'].T)
    dynk = _grouped_1x1(y1, p['k_w2'], C * K2).reshape(B, REGION, C, K2)
    a1 = _lrelu(deg @ p['ca_w1'].T)
    att = jax.nn.sigmoid(_grouped_1x1(a1, p['ca_w2'], C))
    att = att.reshape(B, REGION * C, 1)

    # ---- fused per-sample weight: [guide1; guide2; dyn conv block-diagonal] -
    gw = jnp.concatenate([p['g1_w'], p['g2_w']], axis=0)            # (2R,C,3,3)
    gw = gw.transpose(0, 2, 3, 1).reshape(2 * REGION, K2 * C)       # col = k*C+c
    eye = jnp.eye(C, dtype=jnp.float32)
    wdyn = jnp.einsum('brck,ce->brcke', dynk, eye)                  # diag over c
    wdyn = wdyn.reshape(B, REGION * C, K2 * C)
    w_all = jnp.concatenate(
        [jnp.broadcast_to(gw[None], (B, 2 * REGION, K2 * C)), wdyn], axis=1)
    gb = jnp.concatenate([p['g1_b'], p['g2_b']]).reshape(2 * REGION, 1)
    cw = p['conv_w']
    cb = p['conv_b'].reshape(C, 1)

    # ---- halo-padded, margin-extended flat image (replaces the im2col slab) -
    T = max(_round_up(HWP, 128), 128)   # lane-dense output tile, multiple of 128
    margin = W + 3                      # covers the largest 3x3 tap shift
    L = T + 2 * margin
    xflat = jnp.pad(x, ((0, 0), (0, 0), (1, 1), (1, 1))).reshape(B, C, HWP)
    buf = jnp.pad(xflat, ((0, 0), (0, 0), (margin, L - HWP - margin)))

    mrows = 2 * REGION + REGION * C

    # explicit VMEM budget: double-buffered blocks + scratch + headroom
    def pad_bytes(r, c):
        return _round_up(r, 8) * _round_up(c, 128) * 4
    vmem_bytes = (2 * (pad_bytes(C, L) + pad_bytes(mrows, K2 * C)
                       + pad_bytes(REGION * C, 1) + pad_bytes(C, T))
                  + pad_bytes(K2 * C, T) + pad_bytes(mrows, T)
                  + (4 << 20))

    kernel = functools.partial(da_conv_kernel, wp2=W + 2, margin=margin)

    out = pl.pallas_call(
        kernel,
        out_shape=jax.ShapeDtypeStruct((B, C, T), jnp.float32),
        grid=(B,),
        in_specs=[
            pl.BlockSpec((1, C, L), lambda b: (b, 0, 0)),             # image
            pl.BlockSpec((1, mrows, K2 * C), lambda b: (b, 0, 0)),    # fused W
            pl.BlockSpec((2 * REGION, 1), lambda b: (0, 0)),          # guide b
            pl.BlockSpec((1, REGION * C, 1), lambda b: (b, 0, 0)),    # CA gates
            pl.BlockSpec((C, C), lambda b: (0, 0)),                   # 1x1 w
            pl.BlockSpec((C, 1), lambda b: (0, 0)),                   # 1x1 b
        ],
        out_specs=pl.BlockSpec((1, C, T), lambda b: (b, 0, 0)),
        scratch_shapes=[pltpu.VMEM((K2 * C, T), jnp.float32),         # im2col slab
                        pltpu.VMEM((mrows, T), jnp.float32)],         # matmul result
        compiler_params=pltpu.CompilerParams(
            dimension_semantics=("parallel",),
            vmem_limit_bytes=int(vmem_bytes)),
    )(buf, w_all, gb, att, cw, cb)

    out = out[:, :, :HWP].reshape(B, C, H + 2, W + 2)
    return out[:, :, 1:H + 1, 1:W + 1]


def da_conv_reference(x, deg, p):
    """Pure-JAX reference of the PyTorch forward (for verification)."""
    B, C, H, W = x.shape
    y1 = _lrelu(deg @ p['k_w1'].T)
    dynk = _grouped_1x1(y1, p['k_w2'], C * KSIZE * KSIZE).reshape(
        B, REGION, C, KSIZE, KSIZE)
    a1 = _lrelu(deg @ p['ca_w1'].T)
    att = jax.nn.sigmoid(_grouped_1x1(a1, p['ca_w2'], C)).reshape(B, REGION, C)

    xpad = jnp.pad(x, ((0, 0), (0, 0), (1, 1), (1, 1)))

    def conv3(weight, bias):  # C -> REGION, padding=1, bias
        g = jnp.broadcast_to(bias[None, :, None, None], (B, REGION, H, W))
        for dy in range(KSIZE):
            for dx in range(KSIZE):
                g = g + jnp.einsum('bchw,rc->brhw',
                                   xpad[:, :, dy:dy + H, dx:dx + W],
                                   weight[:, :, dy, dx])
        return g

    out_dyn = jnp.zeros((B, REGION, C, H, W), jnp.float32)
    for dy in range(KSIZE):
        for dx in range(KSIZE):
            out_dyn = out_dyn + (xpad[:, None, :, dy:dy + H, dx:dx + W]
                                 * dynk[:, :, :, dy, dx][..., None, None])
    out_dyn = _lrelu(out_dyn)

    def assign(feat, guide):  # asign_index: one-hot argmax over region dim
        idx = jnp.argmax(guide, axis=1)
        mask = (idx[:, None] == jnp.arange(REGION)[None, :, None, None]
                ).astype(jnp.float32)
        return jnp.sum(feat * mask[:, :, None], axis=1)

    sel1 = assign(out_dyn, conv3(p['g1_w'], p['g1_b']))
    out1 = (jnp.einsum('oc,bchw->bohw', p['conv_w'], sel1)
            + p['conv_b'][None, :, None, None])

    ca_feat = x[:, None] * att[..., None, None]
    sel2 = assign(ca_feat, conv3(p['g2_w'], p['g2_b']))
    return out1 + sel2


if __name__ == "__main__":
    key = jax.random.PRNGKey(0)
    kx, kd, kp = jax.random.split(key, 3)
    B, C, H, W = 2, 4, 16, 16          # channels_in == channels_out == 4
    x = jax.random.normal(kx, (B, C, H, W), dtype=jnp.float32)
    deg = jax.random.normal(kd, (B, C), dtype=jnp.float32)
    params = init_params(kp, C)

    fwd = jax.jit(da_conv_forward)
    out = jax.block_until_ready(fwd(x, deg, params))
    ref = da_conv_reference(x, deg, params)

    assert out.shape == (B, C, H, W)
    err = float(jnp.max(jnp.abs(out - ref)))
    assert jnp.allclose(out, ref, rtol=1e-3, atol=1e-3), err
    print("KERNEL_OK")
</pallas_src>

<mosaic_0001>
module attributes {stable_mosaic.version = 11 : i64} {
  func.func @da_conv_kernel(%arg0: i32, %arg1: memref<1x4x422xf32, #tpu.memory_space<vmem>>, %arg2: memref<1x24x36xf32, #tpu.memory_space<vmem>>, %arg3: memref<8x1xf32, #tpu.memory_space<vmem>>, %arg4: memref<1x16x1xf32, #tpu.memory_space<vmem>>, %arg5: memref<4x4xf32, #tpu.memory_space<vmem>>, %arg6: memref<4x1xf32, #tpu.memory_space<vmem>>, %arg7: memref<1x4x384xf32, #tpu.memory_space<vmem>>, %arg8: memref<36x384xf32, #tpu.memory_space<vmem>>, %arg9: memref<24x384xf32, #tpu.memory_space<vmem>>) attributes {dimension_semantics = [#tpu.dimension_semantics<parallel>], iteration_bounds = array<i64: 2>, scalar_prefetch = 0 : i64, scratch_operands = 2 : i64, tpu.core_type = #tpu.core_type<tc>, window_params = [{transform_indices = @transform_0, window_bounds = array<i64: 1, 4, 422>}, {transform_indices = @transform_1, window_bounds = array<i64: 1, 24, 36>}, {pipeline_mode = #tpu.pipeline_mode<synchronous>, transform_indices = @transform_2, window_bounds = array<i64: 8, 1>}, {transform_indices = @transform_3, window_bounds = array<i64: 1, 16, 1>}, {pipeline_mode = #tpu.pipeline_mode<synchronous>, transform_indices = @transform_4, window_bounds = array<i64: 4, 4>}, {pipeline_mode = #tpu.pipeline_mode<synchronous>, transform_indices = @transform_5, window_bounds = array<i64: 4, 1>}, {transform_indices = @transform_6, window_bounds = array<i64: 1, 4, 384>}]} {
    %c0 = arith.constant 0 : index
    %c0_0 = arith.constant 0 : index
    %c0_1 = arith.constant 0 : index
    %0 = vector.load %arg1[%c0, %c0_0, %c0_1] : memref<1x4x422xf32, #tpu.memory_space<vmem>>, vector<1x4x384xf32>
    %1 = vector.shape_cast %0 : vector<1x4x384xf32> to vector<4x384xf32>
    %c0_2 = arith.constant 0 : index
    %c0_3 = arith.constant 0 : index
    %2 = vector.load %arg8[%c0_2, %c0_3] : memref<36x384xf32, #tpu.memory_space<vmem>>, vector<4x384xf32>
    tpu.vector_store %arg8[%c0_2, %c0_3], %1 {strides = array<i32>} : memref<36x384xf32, #tpu.memory_space<vmem>>, vector<4x384xf32>,
    %c0_4 = arith.constant 0 : index
    %c0_5 = arith.constant 0 : index
    %c1 = arith.constant 1 : index
    %3 = vector.load %arg1[%c0_4, %c0_5, %c1] : memref<1x4x422xf32, #tpu.memory_space<vmem>>, vector<1x4x384xf32>
    %4 = vector.shape_cast %3 : vector<1x4x384xf32> to vector<4x384xf32>
    %c4 = arith.constant 4 : index
    %c0_6 = arith.constant 0 : index
    %5 = vector.load %arg8[%c4, %c0_6] : memref<36x384xf32, #tpu.memory_space<vmem>>, vector<4x384xf32>
    tpu.vector_store %arg8[%c4, %c0_6], %4 {strides = array<i32>} : memref<36x384xf32, #tpu.memory_space<vmem>>, vector<4x384xf32>,
    %c0_7 = arith.constant 0 : index
    %c0_8 = arith.constant 0 : index
    %c2 = arith.constant 2 : index
    %6 = vector.load %arg1[%c0_7, %c0_8, %c2] : memref<1x4x422xf32, #tpu.memory_space<vmem>>, vector<1x4x384xf32>
    %7 = vector.shape_cast %6 : vector<1x4x384xf32> to vector<4x384xf32>
    %c8 = arith.constant 8 : index
    %c0_9 = arith.constant 0 : index
    %8 = vector.load %arg8[%c8, %c0_9] : memref<36x384xf32, #tpu.memory_space<vmem>>, vector<4x384xf32>
    tpu.vector_store %arg8[%c8, %c0_9], %7 {strides = array<i32>} : memref<36x384xf32, #tpu.memory_space<vmem>>, vector<4x384xf32>,
    %c0_10 = arith.constant 0 : index
    %c0_11 = arith.constant 0 : index
    %c18 = arith.constant 18 : index
    %9 = vector.load %arg1[%c0_10, %c0_11, %c18] : memref<1x4x422xf32, #tpu.memory_space<vmem>>, vector<1x4x384xf32>
    %10 = vector.shape_cast %9 : vector<1x4x384xf32> to vector<4x384xf32>
    %c12 = arith.constant 12 : index
    %c0_12 = arith.constant 0 : index
    %11 = vector.load %arg8[%c12, %c0_12] : memref<36x384xf32, #tpu.memory_space<vmem>>, vector<4x384xf32>
    tpu.vector_store %arg8[%c12, %c0_12], %10 {strides = array<i32>} : memref<36x384xf32, #tpu.memory_space<vmem>>, vector<4x384xf32>,
    %c0_13 = arith.constant 0 : index
    %c0_14 = arith.constant 0 : index
    %c19 = arith.constant 19 : index
    %12 = vector.load %arg1[%c0_13, %c0_14, %c19] : memref<1x4x422xf32, #tpu.memory_space<vmem>>, vector<1x4x384xf32>
    %13 = vector.shape_cast %12 : vector<1x4x384xf32> to vector<4x384xf32>
    %c16 = arith.constant 16 : index
    %c0_15 = arith.constant 0 : index
    %14 = vector.load %arg8[%c16, %c0_15] : memref<36x384xf32, #tpu.memory_space<vmem>>, vector<4x384xf32>
    tpu.vector_store %arg8[%c16, %c0_15], %13 {strides = array<i32>} : memref<36x384xf32, #tpu.memory_space<vmem>>, vector<4x384xf32>,
    %c0_16 = arith.constant 0 : index
    %c0_17 = arith.constant 0 : index
    %c20 = arith.constant 20 : index
    %15 = vector.load %arg1[%c0_16, %c0_17, %c20] : memref<1x4x422xf32, #tpu.memory_space<vmem>>, vector<1x4x384xf32>
    %16 = vector.shape_cast %15 : vector<1x4x384xf32> to vector<4x384xf32>
    %c20_18 = arith.constant 20 : index
    %c0_19 = arith.constant 0 : index
    %17 = vector.load %arg8[%c20_18, %c0_19] : memref<36x384xf32, #tpu.memory_space<vmem>>, vector<4x384xf32>
    tpu.vector_store %arg8[%c20_18, %c0_19], %16 {strides = array<i32>} : memref<36x384xf32, #tpu.memory_space<vmem>>, vector<4x384xf32>,
    %c0_20 = arith.constant 0 : index
    %c0_21 = arith.constant 0 : index
    %c36 = arith.constant 36 : index
    %18 = vector.load %arg1[%c0_20, %c0_21, %c36] : memref<1x4x422xf32, #tpu.memory_space<vmem>>, vector<1x4x384xf32>
    %19 = vector.shape_cast %18 : vector<1x4x384xf32> to vector<4x384xf32>
    %c24 = arith.constant 24 : index
    %c0_22 = arith.constant 0 : index
    %20 = vector.load %arg8[%c24, %c0_22] : memref<36x384xf32, #tpu.memory_space<vmem>>, vector<4x384xf32>
    tpu.vector_store %arg8[%c24, %c0_22], %19 {strides = array<i32>} : memref<36x384xf32, #tpu.memory_space<vmem>>, vector<4x384xf32>,
    %c0_23 = arith.constant 0 : index
    %c0_24 = arith.constant 0 : index
    %c37 = arith.constant 37 : index
    %21 = vector.load %arg1[%c0_23, %c0_24, %c37] : memref<1x4x422xf32, #tpu.memory_space<vmem>>, vector<1x4x384xf32>
    %22 = vector.shape_cast %21 : vector<1x4x384xf32> to vector<4x384xf32>
    %c28 = arith.constant 28 : index
    %c0_25 = arith.constant 0 : index
    %23 = vector.load %arg8[%c28, %c0_25] : memref<36x384xf32, #tpu.memory_space<vmem>>, vector<4x384xf32>
    tpu.vector_store %arg8[%c28, %c0_25], %22 {strides = array<i32>} : memref<36x384xf32, #tpu.memory_space<vmem>>, vector<4x384xf32>,
    %c0_26 = arith.constant 0 : index
    %c0_27 = arith.constant 0 : index
    %c38 = arith.constant 38 : index
    %24 = vector.load %arg1[%c0_26, %c0_27, %c38] : memref<1x4x422xf32, #tpu.memory_space<vmem>>, vector<1x4x384xf32>
    %25 = vector.shape_cast %24 : vector<1x4x384xf32> to vector<4x384xf32>
    %c32 = arith.constant 32 : index
    %c0_28 = arith.constant 0 : index
    %26 = vector.load %arg8[%c32, %c0_28] : memref<36x384xf32, #tpu.memory_space<vmem>>, vector<4x384xf32>
    tpu.vector_store %arg8[%c32, %c0_28], %25 {strides = array<i32>} : memref<36x384xf32, #tpu.memory_space<vmem>>, vector<4x384xf32>,
    %c0_29 = arith.constant 0 : index
    %c0_30 = arith.constant 0 : index
    %c0_31 = arith.constant 0 : index
    %27 = vector.load %arg2[%c0_29, %c0_30, %c0_31] : memref<1x24x36xf32, #tpu.memory_space<vmem>>, vector<1x24x36xf32>
    %28 = vector.shape_cast %27 : vector<1x24x36xf32> to vector<24x36xf32>
    %c0_32 = arith.constant 0 : index
    %c0_33 = arith.constant 0 : index
    %29 = vector.load %arg8[%c0_32, %c0_33] : memref<36x384xf32, #tpu.memory_space<vmem>>, vector<36x384xf32>
    %cst = arith.constant dense<0.000000e+00> : vector<24x384xf32>
    %30 = tpu.matmul %28, %29, %cst {dimension_numbers = #tpu.dot_dimension_numbers<[1], [0], [0], [1], [0, 0, 1, 1], [], []>} : vector<24x36xf32>, vector<36x384xf32>, vector<24x384xf32> -> vector<24x384xf32>
    %c0_34 = arith.constant 0 : index
    %c0_35 = arith.constant 0 : index
    %31 = vector.load %arg9[%c0_34, %c0_35] : memref<24x384xf32, #tpu.memory_space<vmem>>, vector<24x384xf32>
    tpu.vector_store %arg9[%c0_34, %c0_35], %30 {strides = array<i32>} : memref<24x384xf32, #tpu.memory_space<vmem>>, vector<24x384xf32>,
    %c0_36 = arith.constant 0 : index
    %c0_37 = arith.constant 0 : index
    %32 = vector.load %arg9[%c0_36, %c0_37] : memref<24x384xf32, #tpu.memory_space<vmem>>, vector<8x384xf32>
    %c0_38 = arith.constant 0 : index
    %c0_39 = arith.constant 0 : index
    %33 = vector.load %arg3[%c0_38, %c0_39] : memref<8x1xf32, #tpu.memory_space<vmem>>, vector<8x1xf32>
    %34 = vector.broadcast %33 : vector<8x1xf32> to vector<8x384xf32>
    %35 = arith.addf %32, %34 : vector<8x384xf32>
    %36 = vector.extract_strided_slice %35 {offsets = [0, 0], sizes = [4, 384], strides = [1, 1]} : vector<8x384xf32> to vector<4x384xf32>
    %37 = vector.extract_strided_slice %36 {offsets = [0, 0], sizes = [1, 384], strides = [1, 1]} : vector<4x384xf32> to vector<1x384xf32>
    %c0_i32 = arith.constant 0 : i32
    %38 = vector.broadcast %c0_i32 : i32 to vector<1x384xi32>
    %39 = vector.extract_strided_slice %36 {offsets = [1, 0], sizes = [1, 384], strides = [1, 1]} : vector<4x384xf32> to vector<1x384xf32>
    %40 = arith.cmpf ogt, %39, %37 : vector<1x384xf32>
    %41 = arith.select %40, %39, %37 : vector<1x384xi1>, vector<1x384xf32>
    %c1_i32 = arith.constant 1 : i32
    %42 = vector.broadcast %c1_i32 : i32 to vector<1x384xi32>
    %43 = arith.select %40, %42, %38 : vector<1x384xi1>, vector<1x384xi32>
    %44 = vector.extract_strided_slice %36 {offsets = [2, 0], sizes = [1, 384], strides = [1, 1]} : vector<4x384xf32> to vector<1x384xf32>
    %45 = arith.cmpf ogt, %44, %41 : vector<1x384xf32>
    %46 = arith.select %45, %44, %41 : vector<1x384xi1>, vector<1x384xf32>
    %c2_i32 = arith.constant 2 : i32
    %47 = vector.broadcast %c2_i32 : i32 to vector<1x384xi32>
    %48 = arith.select %45, %47, %43 : vector<1x384xi1>, vector<1x384xi32>
    %49 = vector.extract_strided_slice %36 {offsets = [3, 0], sizes = [1, 384], strides = [1, 1]} : vector<4x384xf32> to vector<1x384xf32>
    %50 = arith.cmpf ogt, %49, %46 : vector<1x384xf32>
    %c3_i32 = arith.constant 3 : i32
    %51 = vector.broadcast %c3_i32 : i32 to vector<1x384xi32>
    %52 = arith.select %50, %51, %48 : vector<1x384xi1>, vector<1x384xi32>
    %53 = tpu.iota {dimensions = array<i32: 0>} : vector<4x384xi32>
    %54 = vector.broadcast %52 : vector<1x384xi32> to vector<4x384xi32>
    %55 = arith.cmpi eq, %53, %54 : vector<4x384xi32>
    %56 = arith.extui %55 : vector<4x384xi1> to vector<4x384xi32>
    %57 = arith.sitofp %56 : vector<4x384xi32> to vector<4x384xf32>
    %58 = vector.extract_strided_slice %35 {offsets = [4, 0], sizes = [4, 384], strides = [1, 1]} : vector<8x384xf32> to vector<4x384xf32>
    %59 = vector.extract_strided_slice %58 {offsets = [0, 0], sizes = [1, 384], strides = [1, 1]} : vector<4x384xf32> to vector<1x384xf32>
    %c0_i32_40 = arith.constant 0 : i32
    %60 = vector.broadcast %c0_i32_40 : i32 to vector<1x384xi32>
    %61 = vector.extract_strided_slice %58 {offsets = [1, 0], sizes = [1, 384], strides = [1, 1]} : vector<4x384xf32> to vector<1x384xf32>
    %62 = arith.cmpf ogt, %61, %59 : vector<1x384xf32>
    %63 = arith.select %62, %61, %59 : vector<1x384xi1>, vector<1x384xf32>
    %c1_i32_41 = arith.constant 1 : i32
    %64 = vector.broadcast %c1_i32_41 : i32 to vector<1x384xi32>
    %65 = arith.select %62, %64, %60 : vector<1x384xi1>, vector<1x384xi32>
    %66 = vector.extract_strided_slice %58 {offsets = [2, 0], sizes = [1, 384], strides = [1, 1]} : vector<4x384xf32> to vector<1x384xf32>
    %67 = arith.cmpf ogt, %66, %63 : vector<1x384xf32>
    %68 = arith.select %67, %66, %63 : vector<1x384xi1>, vector<1x384xf32>
    %c2_i32_42 = arith.constant 2 : i32
    %69 = vector.broadcast %c2_i32_42 : i32 to vector<1x384xi32>
    %70 = arith.select %67, %69, %65 : vector<1x384xi1>, vector<1x384xi32>
    %71 = vector.extract_strided_slice %58 {offsets = [3, 0], sizes = [1, 384], strides = [1, 1]} : vector<4x384xf32> to vector<1x384xf32>
    %72 = arith.cmpf ogt, %71, %68 : vector<1x384xf32>
    %c3_i32_43 = arith.constant 3 : i32
    %73 = vector.broadcast %c3_i32_43 : i32 to vector<1x384xi32>
    %74 = arith.select %72, %73, %70 : vector<1x384xi1>, vector<1x384xi32>
    %75 = tpu.iota {dimensions = array<i32: 0>} : vector<4x384xi32>
    %76 = vector.broadcast %74 : vector<1x384xi32> to vector<4x384xi32>
    %77 = arith.cmpi eq, %75, %76 : vector<4x384xi32>
    %78 = arith.extui %77 : vector<4x384xi1> to vector<4x384xi32>
    %79 = arith.sitofp %78 : vector<4x384xi32> to vector<4x384xf32>
    %cst_44 = arith.constant 0.000000e+00 : f32
    %80 = vector.broadcast %cst_44 : f32 to vector<4x384xf32>
    %c8_45 = arith.constant 8 : index
    %c0_46 = arith.constant 0 : index
    %81 = vector.load %arg9[%c8_45, %c0_46] : memref<24x384xf32, #tpu.memory_space<vmem>>, vector<4x384xf32>
    %cst_47 = arith.constant 0.000000e+00 : f32
    %82 = vector.broadcast %cst_47 : f32 to vector<4x384xf32>
    %83 = arith.cmpf ogt, %81, %82 : vector<4x384xf32>
    %cst_48 = arith.constant 1.000000e-01 : f32
    %84 = vector.broadcast %cst_48 : f32 to vector<4x384xf32>
    %85 = arith.mulf %84, %81 : vector<4x384xf32>
    %86 = arith.select %83, %81, %85 : vector<4x384xi1>, vector<4x384xf32>
    %87 = vector.extract_strided_slice %57 {offsets = [0, 0], sizes = [1, 384], strides = [1, 1]} : vector<4x384xf32> to vector<1x384xf32>
    %88 = vector.broadcast %87 : vector<1x384xf32> to vector<4x384xf32>
    %89 = arith.mulf %86, %88 : vector<4x384xf32>
    %90 = arith.addf %80, %89 : vector<4x384xf32>
    %c12_49 = arith.constant 12 : index
    %c0_50 = arith.constant 0 : index
    %91 = vector.load %arg9[%c12_49, %c0_50] : memref<24x384xf32, #tpu.memory_space<vmem>>, vector<4x384xf32>
    %cst_51 = arith.constant 0.000000e+00 : f32
    %92 = vector.broadcast %cst_51 : f32 to vector<4x384xf32>
    %93 = arith.cmpf ogt, %91, %92 : vector<4x384xf32>
    %cst_52 = arith.constant 1.000000e-01 : f32
    %94 = vector.broadcast %cst_52 : f32 to vector<4x384xf32>
    %95 = arith.mulf %94, %91 : vector<4x384xf32>
    %96 = arith.select %93, %91, %95 : vector<4x384xi1>, vector<4x384xf32>
    %97 = vector.extract_strided_slice %57 {offsets = [1, 0], sizes = [1, 384], strides = [1, 1]} : vector<4x384xf32> to vector<1x384xf32>
    %98 = vector.broadcast %97 : vector<1x384xf32> to vector<4x384xf32>
    %99 = arith.mulf %96, %98 : vector<4x384xf32>
    %100 = arith.addf %90, %99 : vector<4x384xf32>
    %c16_53 = arith.constant 16 : index
    %c0_54 = arith.constant 0 : index
    %101 = vector.load %arg9[%c16_53, %c0_54] : memref<24x384xf32, #tpu.memory_space<vmem>>, vector<4x384xf32>
    %cst_55 = arith.constant 0.000000e+00 : f32
    %102 = vector.broadcast %cst_55 : f32 to vector<4x384xf32>
    %103 = arith.cmpf ogt, %101, %102 : vector<4x384xf32>
    %cst_56 = arith.constant 1.000000e-01 : f32
    %104 = vector.broadcast %cst_56 : f32 to vector<4x384xf32>
    %105 = arith.mulf %104, %101 : vector<4x384xf32>
    %106 = arith.select %103, %101, %105 : vector<4x384xi1>, vector<4x384xf32>
    %107 = vector.extract_strided_slice %57 {offsets = [2, 0], sizes = [1, 384], strides = [1, 1]} : vector<4x384xf32> to vector<1x384xf32>
    %108 = vector.broadcast %107 : vector<1x384xf32> to vector<4x384xf32>
    %109 = arith.mulf %106, %108 : vector<4x384xf32>
    %110 = arith.addf %100, %109 : vector<4x384xf32>
    %c20_57 = arith.constant 20 : index
    %c0_58 = arith.constant 0 : index
    %111 = vector.load %arg9[%c20_57, %c0_58] : memref<24x384xf32, #tpu.memory_space<vmem>>, vector<4x384xf32>
    %cst_59 = arith.constant 0.000000e+00 : f32
    %112 = vector.broadcast %cst_59 : f32 to vector<4x384xf32>
    %113 = arith.cmpf ogt, %111, %112 : vector<4x384xf32>
    %cst_60 = arith.constant 1.000000e-01 : f32
    %114 = vector.broadcast %cst_60 : f32 to vector<4x384xf32>
    %115 = arith.mulf %114, %111 : vector<4x384xf32>
    %116 = arith.select %113, %111, %115 : vector<4x384xi1>, vector<4x384xf32>
    %117 = vector.extract_strided_slice %57 {offsets = [3, 0], sizes = [1, 384], strides = [1, 1]} : vector<4x384xf32> to vector<1x384xf32>
    %118 = vector.broadcast %117 : vector<1x384xf32> to vector<4x384xf32>
    %119 = arith.mulf %116, %118 : vector<4x384xf32>
    %120 = arith.addf %110, %119 : vector<4x384xf32>
    %c0_61 = arith.constant 0 : index
    %c0_62 = arith.constant 0 : index
    %121 = vector.load %arg5[%c0_61, %c0_62] : memref<4x4xf32, #tpu.memory_space<vmem>>, vector<4x4xf32>
    %c0_63 = arith.constant 0 : index
    %c0_64 = arith.constant 0 : index
    %122 = vector.load %arg6[%c0_63, %c0_64] : memref<4x1xf32, #tpu.memory_space<vmem>>, vector<4x1xf32>
    %123 = vector.extract_strided_slice %120 {offsets = [0, 0], sizes = [1, 384], strides = [1, 1]} : vector<4x384xf32> to vector<1x384xf32>
    %124 = vector.extract_strided_slice %121 {offsets = [0, 0], sizes = [4, 1], strides = [1, 1]} : vector<4x4xf32> to vector<4x1xf32>
    %125 = vector.broadcast %123 : vector<1x384xf32> to vector<4x384xf32>
    %126 = vector.broadcast %124 : vector<4x1xf32> to vector<4x384xf32>
    %127 = arith.mulf %125, %126 : vector<4x384xf32>
    %128 = vector.broadcast %122 : vector<4x1xf32> to vector<4x384xf32>
    %129 = arith.addf %128, %127 : vector<4x384xf32>
    %130 = vector.extract_strided_slice %120 {offsets = [1, 0], sizes = [1, 384], strides = [1, 1]} : vector<4x384xf32> to vector<1x384xf32>
    %131 = vector.extract_strided_slice %121 {offsets = [0, 1], sizes = [4, 1], strides = [1, 1]} : vector<4x4xf32> to vector<4x1xf32>
    %132 = vector.broadcast %130 : vector<1x384xf32> to vector<4x384xf32>
    %133 = vector.broadcast %131 : vector<4x1xf32> to vector<4x384xf32>
    %134 = arith.mulf %132, %133 : vector<4x384xf32>
    %135 = arith.addf %129, %134 : vector<4x384xf32>
    %136 = vector.extract_strided_slice %120 {offsets = [2, 0], sizes = [1, 384], strides = [1, 1]} : vector<4x384xf32> to vector<1x384xf32>
    %137 = vector.extract_strided_slice %121 {offsets = [0, 2], sizes = [4, 1], strides = [1, 1]} : vector<4x4xf32> to vector<4x1xf32>
    %138 = vector.broadcast %136 : vector<1x384xf32> to vector<4x384xf32>
    %139 = vector.broadcast %137 : vector<4x1xf32> to vector<4x384xf32>
    %140 = arith.mulf %138, %139 : vector<4x384xf32>
    %141 = arith.addf %135, %140 : vector<4x384xf32>
    %142 = vector.extract_strided_slice %120 {offsets = [3, 0], sizes = [1, 384], strides = [1, 1]} : vector<4x384xf32> to vector<1x384xf32>
    %143 = vector.extract_strided_slice %121 {offsets = [0, 3], sizes = [4, 1], strides = [1, 1]} : vector<4x4xf32> to vector<4x1xf32>
    %144 = vector.broadcast %142 : vector<1x384xf32> to vector<4x384xf32>
    %145 = vector.broadcast %143 : vector<4x1xf32> to vector<4x384xf32>
    %146 = arith.mulf %144, %145 : vector<4x384xf32>
    %147 = arith.addf %141, %146 : vector<4x384xf32>
    %c0_65 = arith.constant 0 : index
    %c0_66 = arith.constant 0 : index
    %c0_67 = arith.constant 0 : index
    %148 = vector.load %arg4[%c0_65, %c0_66, %c0_67] : memref<1x16x1xf32, #tpu.memory_space<vmem>>, vector<1x4x1xf32>
    %149 = vector.shape_cast %148 : vector<1x4x1xf32> to vector<4x1xf32>
    %150 = vector.extract_strided_slice %79 {offsets = [0, 0], sizes = [1, 384], strides = [1, 1]} : vector<4x384xf32> to vector<1x384xf32>
    %151 = vector.broadcast %149 : vector<4x1xf32> to vector<4x384xf32>
    %152 = vector.broadcast %150 : vector<1x384xf32> to vector<4x384xf32>
    %153 = arith.mulf %151, %152 : vector<4x384xf32>
    %c0_68 = arith.constant 0 : index
    %c4_69 = arith.constant 4 : index
    %c0_70 = arith.constant 0 : index
    %154 = vector.load %arg4[%c0_68, %c4_69, %c0_70] : memref<1x16x1xf32, #tpu.memory_space<vmem>>, vector<1x4x1xf32>
    %155 = vector.shape_cast %154 : vector<1x4x1xf32> to vector<4x1xf32>
    %156 = vector.extract_strided_slice %79 {offsets = [1, 0], sizes = [1, 384], strides = [1, 1]} : vector<4x384xf32> to vector<1x384xf32>
    %157 = vector.broadcast %155 : vector<4x1xf32> to vector<4x384xf32>
    %158 = vector.broadcast %156 : vector<1x384xf32> to vector<4x384xf32>
    %159 = arith.mulf %157, %158 : vector<4x384xf32>
    %160 = arith.addf %153, %159 : vector<4x384xf32>
    %c0_71 = arith.constant 0 : index
    %c8_72 = arith.constant 8 : index
    %c0_73 = arith.constant 0 : index
    %161 = vector.load %arg4[%c0_71, %c8_72, %c0_73] : memref<1x16x1xf32, #tpu.memory_space<vmem>>, vector<1x4x1xf32>
    %162 = vector.shape_cast %161 : vector<1x4x1xf32> to vector<4x1xf32>
    %163 = vector.extract_strided_slice %79 {offsets = [2, 0], sizes = [1, 384], strides = [1, 1]} : vector<4x384xf32> to vector<1x384xf32>
    %164 = vector.broadcast %162 : vector<4x1xf32> to vector<4x384xf32>
    %165 = vector.broadcast %163 : vector<1x384xf32> to vector<4x384xf32>
    %166 = arith.mulf %164, %165 : vector<4x384xf32>
    %167 = arith.addf %160, %166 : vector<4x384xf32>
    %c0_74 = arith.constant 0 : index
    %c12_75 = arith.constant 12 : index
    %c0_76 = arith.constant 0 : index
    %168 = vector.load %arg4[%c0_74, %c12_75, %c0_76] : memref<1x16x1xf32, #tpu.memory_space<vmem>>, vector<1x4x1xf32>
    %169 = vector.shape_cast %168 : vector<1x4x1xf32> to vector<4x1xf32>
    %170 = vector.extract_strided_slice %79 {offsets = [3, 0], sizes = [1, 384], strides = [1, 1]} : vector<4x384xf32> to vector<1x384xf32>
    %171 = vector.broadcast %169 : vector<4x1xf32> to vector<4x384xf32>
    %172 = vector.broadcast %170 : vector<1x384xf32> to vector<4x384xf32>
    %173 = arith.mulf %171, %172 : vector<4x384xf32>
    %174 = arith.addf %167, %173 : vector<4x384xf32>
    %c16_77 = arith.constant 16 : index
    %c0_78 = arith.constant 0 : index
    %175 = vector.load %arg8[%c16_77, %c0_78] : memref<36x384xf32, #tpu.memory_space<vmem>>, vector<4x384xf32>
    %176 = arith.mulf %175, %174 : vector<4x384xf32>
    %177 = arith.addf %147, %176 : vector<4x384xf32>
    %c0_79 = arith.constant 0 : index
    %c0_80 = arith.constant 0 : index
    %c0_81 = arith.constant 0 : index
    %178 = vector.load %arg7[%c0_79, %c0_80, %c0_81] : memref<1x4x384xf32, #tpu.memory_space<vmem>>, vector<1x4x384xf32>
    %179 = vector.shape_cast %178 : vector<1x4x384xf32> to vector<4x384xf32>
    %180 = vector.shape_cast %177 : vector<4x384xf32> to vector<1x4x384xf32>
    tpu.vector_store %arg7[%c0_79, %c0_80, %c0_81], %180 {strides = array<i32>} : memref<1x4x384xf32, #tpu.memory_space<vmem>>, vector<1x4x384xf32>,
    return
  }
  func.func @transform_0(%arg0: i32) -> (i32, i32, i32) {
    %c0_i32 = arith.constant 0 : i32
    %c0_i32_0 = arith.constant 0 : i32
    %c0_i32_1 = arith.constant 0 : i32
    return %arg0, %c0_i32, %c0_i32_0 : i32, i32, i32
  }
  func.func @transform_1(%arg0: i32) -> (i32, i32, i32) {
    %c0_i32 = arith.constant 0 : i32
    %c0_i32_0 = arith.constant 0 : i32
    %c0_i32_1 = arith.constant 0 : i32
    return %arg0, %c0_i32, %c0_i32_0 : i32, i32, i32
  }
  func.func @transform_2(%arg0: i32) -> (i32, i32) {
    %c0_i32 = arith.constant 0 : i32
    %c0_i32_0 = arith.constant 0 : i32
    %c0_i32_1 = arith.constant 0 : i32
    return %c0_i32, %c0_i32_0 : i32, i32
  }
  func.func @transform_3(%arg0: i32) -> (i32, i32, i32) {
    %c0_i32 = arith.constant 0 : i32
    %c0_i32_0 = arith.constant 0 : i32
    %c0_i32_1 = arith.constant 0 : i32
    return %arg0, %c0_i32, %c0_i32_0 : i32, i32, i32
  }
  func.func @transform_4(%arg0: i32) -> (i32, i32) {
    %c0_i32 = arith.constant 0 : i32
    %c0_i32_0 = arith.constant 0 : i32
    %c0_i32_1 = arith.constant 0 : i32
    return %c0_i32, %c0_i32_0 : i32, i32
  }
  func.func @transform_5(%arg0: i32) -> (i32, i32) {
    %c0_i32 = arith.constant 0 : i32
    %c0_i32_0 = arith.constant 0 : i32
    %c0_i32_1 = arith.constant 0 : i32
    return %c0_i32, %c0_i32_0 : i32, i32
  }
  func.func @transform_6(%arg0: i32) -> (i32, i32, i32) {
    %c0_i32 = arith.constant 0 : i32
    %c0_i32_0 = arith.constant 0 : i32
    %c0_i32_1 = arith.constant 0 : i32
    return %arg0, %c0_i32, %c0_i32_0 : i32, i32, i32
  }
}

</mosaic_0001>

<llo_original>
// kernel: da_conv_forward.1
$region0: #{da_conv_forward.1}
  #allocation0 [shape = 'u32[]', space=smem, size = 0x4, offset = 0x4, fixed_abs, tag = 'smem constant byte address 0x4 - core index']
  #allocation1 [shape = 'u32[144,128]{1,0:T(1,128)}', space=vmem, size = 0x12000, scoped, tag = 'internal scratch']
  #allocation2 [shape = 'f32[36,384]{1,0:T(8,128)}', space=vmem, size = 0xf000, scoped, tag = 'scratch operand']
  #allocation3 [shape = 'f32[24,384]{1,0:T(8,128)}', space=vmem, size = 0x9000, scoped, tag = 'scratch operand']
  %s0 = inlined_call_operand.vmem [shape: f32[2,4,422], index: 0, kind: input, shape index: {}]
  %s1 = inlined_call_operand.vmem [shape: f32[2,24,36], index: 1, kind: input, shape index: {}]
  %s2 = inlined_call_operand.vmem [shape: f32[8,1], index: 2, kind: input, shape index: {}]
  %s3 = inlined_call_operand.vmem [shape: f32[2,16,1], index: 3, kind: input, shape index: {}]
  %s4 = inlined_call_operand.vmem [shape: f32[4,4], index: 4, kind: input, shape index: {}]
  %s5 = inlined_call_operand.vmem [shape: f32[4,1], index: 5, kind: input, shape index: {}]
  %s6 = inlined_call_operand.vmem [shape: f32[2,4,384], index: 6, kind: output, shape index: {}]
  %s7 = sld [smem:[#allocation0]]
  $region57: #{da_conv_forward.1} parent=0
    _
  %s9 = ssub.s32 1, %s7
  %s10 = scalar_select 0, %s9, %s7
  loop: start=0, step=1, limit=4
  $region2: #{da_conv_forward.1} parent=0 // loop_pre_header
    _
  $region3: #{da_conv_forward.1} parent=0 // loop_header
    %s12 = sphi 0, %s16
    %p13 = scmp.ge.s32.totalorder %s12, 4
    %s22 = sphi 0, %s24
    %s25 = sphi 0, %s22
    %s26 = sphi 0, %s25
    %s42 = sphi 0, %s26
    %s48 = sphi 0, %s50
    %s51 = sphi 0, %s48
    %s52 = sphi 0, %s51
    %s68 = sphi 0, %s52
    %s72 = sphi 0, %s72
    %s74 = sphi 0, %s72
    %s75 = sphi 0, %s74
    %s89 = sphi 0, %s75
    %s95 = sphi 0, %s97
    %s98 = sphi 0, %s95
    %s99 = sphi 0, %s98
    %s115 = sphi 0, %s99
    %s119 = sphi 0, %s119
    %s121 = sphi 0, %s119
    %s122 = sphi 0, %s121
    %s136 = sphi 0, %s122
    %s140 = sphi 0, %s140
    %s142 = sphi 0, %s140
    %s143 = sphi 0, %s142
    %s157 = sphi 0, %s143
    %s163 = sphi 0, %s165
    %s166 = sphi 0, %s163
    %s167 = sphi 0, %s166
    %s183 = sphi 0, %s167
  $region4: #{da_conv_forward.1} parent=0 // loop_header_branch
    %15 = sbr.rel (%p13) target = $region8
  $region5: #{da_conv_forward.1} parent=0 // loop_body
    %s17 = ssub.s32 %s12, 1
    %s18 = ssub.s32 %s12, 2
    %s19 = sadd.s32 %s12, 1
    %s20 = ssub.s32 %s12, %s19
    %p21 = scmp.eq.s32.totalorder %s20, 0
    %s23 = sadd.s32 %s22, 1
    %s24 = scalar_select %p21, %s22, %s23
    %p27 = pneg %p21
    %p28 = scmp.eq.s32.totalorder %s12, 1
    %p29 = por %p27, %p28
    %p30 = scmp.ne.s32.totalorder %s22, %s25
    %p31 = scmp.eq.s32.totalorder %s12, 0
    %p32 = por %p30, %p31
    %p33 = scmp.ne.s32.totalorder %s22, %s25
    %p34 = scmp.eq.s32.totalorder %s17, 1
    %p35 = por %p33, %p34
    %p36 = scmp.ne.s32.totalorder %s25, %s26
    %p37 = scmp.eq.s32.totalorder %s17, 0
    %p38 = por %p36, %p37
    %p39 = scmp.ne.s32.totalorder %s25, %s26
    %p40 = scmp.eq.s32.totalorder %s18, 1
    %p41 = por %p39, %p40
    %p43 = scmp.ne.s32.totalorder %s26, %s42
    %p44 = scmp.eq.s32.totalorder %s18, 0
    %p45 = por %p43, %p44
    %s46 = ssub.s32 %s12, %s19
    %p47 = scmp.eq.s32.totalorder %s46, 0
    %s49 = sadd.s32 %s48, 1
    %s50 = scalar_select %p47, %s48, %s49
    %p53 = pneg %p47
    %p54 = scmp.eq.s32.totalorder %s12, 1
    %p55 = por %p53, %p54
    %p56 = scmp.ne.s32.totalorder %s48, %s51
    %p57 = scmp.eq.s32.totalorder %s12, 0
    %p58 = por %p56, %p57
    %p59 = scmp.ne.s32.totalorder %s48, %s51
    %p60 = scmp.eq.s32.totalorder %s17, 1
    %p61 = por %p59, %p60
    %p62 = scmp.ne.s32.totalorder %s51, %s52
    %p63 = scmp.eq.s32.totalorder %s17, 0
    %p64 = por %p62, %p63
    %p65 = scmp.ne.s32.totalorder %s51, %s52
    %p66 = scmp.eq.s32.totalorder %s18, 1
    %p67 = por %p65, %p66
    %p69 = scmp.ne.s32.totalorder %s52, %s68
    %p70 = scmp.eq.s32.totalorder %s18, 0
    %p71 = por %p69, %p70
    %s73 = sadd.s32 %s72, 1
    %p76 = scmp.eq.s32.totalorder %s12, 1
    %p77 = scmp.ne.s32.totalorder %s72, %s74
    %p78 = scmp.eq.s32.totalorder %s12, 0
    %p79 = por %p77, %p78
    %p80 = scmp.ne.s32.totalorder %s72, %s74
    %p81 = scmp.eq.s32.totalorder %s17, 1
    %p82 = por %p80, %p81
    %p83 = scmp.ne.s32.totalorder %s74, %s75
    %p84 = scmp.eq.s32.totalorder %s17, 0
    %p85 = por %p83, %p84
    %p86 = scmp.ne.s32.totalorder %s74, %s75
    %p87 = scmp.eq.s32.totalorder %s18, 1
    %p88 = por %p86, %p87
    %p90 = scmp.ne.s32.totalorder %s75, %s89
    %p91 = scmp.eq.s32.totalorder %s18, 0
    %p92 = por %p90, %p91
    %s93 = ssub.s32 %s12, %s19
    %p94 = scmp.eq.s32.totalorder %s93, 0
    %s96 = sadd.s32 %s95, 1
    %s97 = scalar_select %p94, %s95, %s96
    %p100 = pneg %p94
    %p101 = scmp.eq.s32.totalorder %s12, 1
    %p102 = por %p100, %p101
    %p103 = scmp.ne.s32.totalorder %s95, %s98
    %p104 = scmp.eq.s32.totalorder %s12, 0
    %p105 = por %p103, %p104
    %p106 = scmp.ne.s32.totalorder %s95, %s98
    %p107 = scmp.eq.s32.totalorder %s17, 1
    %p108 = por %p106, %p107
    %p109 = scmp.ne.s32.totalorder %s98, %s99
    %p110 = scmp.eq.s32.totalorder %s17, 0
    %p111 = por %p109, %p110
    %p112 = scmp.ne.s32.totalorder %s98, %s99
    %p113 = scmp.eq.s32.totalorder %s18, 1
    %p114 = por %p112, %p113
    %p116 = scmp.ne.s32.totalorder %s99, %s115
    %p117 = scmp.eq.s32.totalorder %s18, 0
    %p118 = por %p116, %p117
    %s120 = sadd.s32 %s119, 1
    %p123 = scmp.eq.s32.totalorder %s12, 1
    %p124 = scmp.ne.s32.totalorder %s119, %s121
    %p125 = scmp.eq.s32.totalorder %s12, 0
    %p126 = por %p124, %p125
    %p127 = scmp.ne.s32.totalorder %s119, %s121
    %p128 = scmp.eq.s32.totalorder %s17, 1
    %p129 = por %p127, %p128
    %p130 = scmp.ne.s32.totalorder %s121, %s122
    %p131 = scmp.eq.s32.totalorder %s17, 0
    %p132 = por %p130, %p131
    %p133 = scmp.ne.s32.totalorder %s121, %s122
    %p134 = scmp.eq.s32.totalorder %s18, 1
    %p135 = por %p133, %p134
    %p137 = scmp.ne.s32.totalorder %s122, %s136
    %p138 = scmp.eq.s32.totalorder %s18, 0
    %p139 = por %p137, %p138
    %s141 = sadd.s32 %s140, 1
    %p144 = scmp.eq.s32.totalorder %s12, 1
    %p145 = scmp.ne.s32.totalorder %s140, %s142
    %p146 = scmp.eq.s32.totalorder %s12, 0
    %p147 = por %p145, %p146
    %p148 = scmp.ne.s32.totalorder %s140, %s142
    %p149 = scmp.eq.s32.totalorder %s17, 1
    %p150 = por %p148, %p149
    %p151 = scmp.ne.s32.totalorder %s142, %s143
    %p152 = scmp.eq.s32.totalorder %s17, 0
    %p153 = por %p151, %p152
    %p154 = scmp.ne.s32.totalorder %s142, %s143
    %p155 = scmp.eq.s32.totalorder %s18, 1
    %p156 = por %p154, %p155
    %p158 = scmp.ne.s32.totalorder %s143, %s157
    %p159 = scmp.eq.s32.totalorder %s18, 0
    %p160 = por %p158, %p159
    %s161 = ssub.s32 %s12, %s19
    %p162 = scmp.eq.s32.totalorder %s161, 0
    %s164 = sadd.s32 %s163, 1
    %s165 = scalar_select %p162, %s163, %s164
    %p168 = pneg %p162
    %p169 = scmp.eq.s32.totalorder %s12, 1
    %p170 = por %p168, %p169
    %p171 = scmp.ne.s32.totalorder %s163, %s166
    %p172 = scmp.eq.s32.totalorder %s12, 0
    %p173 = por %p171, %p172
    %p174 = scmp.ne.s32.totalorder %s163, %s166
    %p175 = scmp.eq.s32.totalorder %s17, 1
    %p176 = por %p174, %p175
    %p177 = scmp.ne.s32.totalorder %s166, %s167
    %p178 = scmp.eq.s32.totalorder %s17, 0
    %p179 = por %p177, %p178
    %p180 = scmp.ne.s32.totalorder %s166, %s167
    %p181 = scmp.eq.s32.totalorder %s18, 1
    %p182 = por %p180, %p181
    %p184 = scmp.ne.s32.totalorder %s167, %s183
    %p185 = scmp.eq.s32.totalorder %s18, 0
    %p186 = por %p184, %p185
    %p187 = scmp.le.s32.totalorder 1, %s12
    %p188 = scmp.lt.s32.totalorder %s12, 3
    %p189 = pnand %p187, %p188
    %p190 = pneg %p189
    // Predicated region
    $region9: #{da_conv_forward.1} parent=5 // pred_check
      _
    $region10: #{da_conv_forward.1} parent=5 // pred_check_branch
      %192 = sbr.rel (%p189) target = $region12
    $region11: #{da_conv_forward.1} parent=5 // pred_region
      %s193 = ssub.s32 %s12, 1
      // Predicated region
      $region13: #{da_conv_forward.1} parent=11 // pred_check
        %p194 = pneg %p85
      $region14: #{da_conv_forward.1} parent=11 // pred_check_branch
        %196 = sbr.rel (%p194) target = $region16
      $region15: #{da_conv_forward.1} parent=11 // pred_region
        _
      $region16: #{da_conv_forward.1} parent=11 // pred_fallthru
        _
      // Predicated region
      $region17: #{da_conv_forward.1} parent=11 // pred_check
        %p197 = pneg %p132
      $region18: #{da_conv_forward.1} parent=11 // pred_check_branch
        %199 = sbr.rel (%p197) target = $region20
      $region19: #{da_conv_forward.1} parent=11 // pred_region
        _
      $region20: #{da_conv_forward.1} parent=11 // pred_fallthru
        _
      // Predicated region
      $region21: #{da_conv_forward.1} parent=11 // pred_check
        %p200 = pneg %p153
      $region22: #{da_conv_forward.1} parent=11 // pred_check_branch
        %202 = sbr.rel (%p200) target = $region24
      $region23: #{da_conv_forward.1} parent=11 // pred_region
        _
      $region24: #{da_conv_forward.1} parent=11 // pred_fallthru
        _
    $region12: #{da_conv_forward.1} parent=5 // pred_fallthru
      _
    %p203 = scmp.lt.s32.totalorder %s12, 2
    // Predicated region
    $region25: #{da_conv_forward.1} parent=5 // pred_check
      %p204 = pneg %p203
    $region26: #{da_conv_forward.1} parent=5 // pred_check_branch
      %206 = sbr.rel (%p204) target = $region28
    $region27: #{da_conv_forward.1} parent=5 // pred_region
      // Predicated region
      $region29: #{da_conv_forward.1} parent=27 // pred_check
        %p207 = pneg %p32
      $region30: #{da_conv_forward.1} parent=27 // pred_check_branch
        %209 = sbr.rel (%p207) target = $region32
      $region31: #{da_conv_forward.1} parent=27 // pred_region
        %p210 = scmp.lt.s32.totalorder %s12, 1
        %s211 = scalar_select %p210, %s12, 1
        %s212 = smul.addr %s211, 4
        %s213 = smul.addr %s212, 4
        %s214 = scalar_lea.vmem %s0, %s213
      $region32: #{da_conv_forward.1} parent=27 // pred_fallthru
        _
      // Predicated region
      $region33: #{da_conv_forward.1} parent=27 // pred_check
        %p215 = pneg %p58
      $region34: #{da_conv_forward.1} parent=27 // pred_check_branch
        %217 = sbr.rel (%p215) target = $region36
      $region35: #{da_conv_forward.1} parent=27 // pred_region
        %p218 = scmp.lt.s32.totalorder %s12, 1
        %s219 = scalar_select %p218, %s12, 1
        %s220 = smul.addr %s219, 3
        %s221 = smul.addr %s220, 8
        %s222 = scalar_lea.vmem %s1, %s221
      $region36: #{da_conv_forward.1} parent=27 // pred_fallthru
        _
      // Predicated region
      $region37: #{da_conv_forward.1} parent=27 // pred_check
        %p223 = pneg %p105
      $region38: #{da_conv_forward.1} parent=27 // pred_check_branch
        %225 = sbr.rel (%p223) target = $region40
      $region39: #{da_conv_forward.1} parent=27 // pred_region
        %p226 = scmp.lt.s32.totalorder %s12, 1
        %s227 = scalar_select %p226, %s12, 1
        %s228 = smul.addr %s227, 2
        %s229 = smul.addr %s228, 8
        %s230 = scalar_lea.vmem %s3, %s229
      $region40: #{da_conv_forward.1} parent=27 // pred_fallthru
        _
    $region28: #{da_conv_forward.1} parent=5 // pred_fallthru
      _
    %p231 = scmp.le.s32.totalorder 1, %s12
    %p232 = scmp.lt.s32.totalorder %s12, 3
    %p233 = pnand %p231, %p232
    %p234 = pneg %p233
    // Predicated region
    $region41: #{da_conv_forward.1} parent=5 // pred_check
      _
    $region42: #{da_conv_forward.1} parent=5 // pred_check_branch
      %236 = sbr.rel (%p233) target = $region44
    $region43: #{da_conv_forward.1} parent=5 // pred_region
      %s237 = ssub.s32 %s12, 1
      %p238 = scmp.lt.s32.totalorder %s17, 1
      %s239 = scalar_select %p238, %s17, 1
      %s240 = smul.addr %s239, 4
      %s241 = smul.addr %s240, 4
      %s242 = scalar_lea.vmem %s0, %s241
      %p243 = pneg %p38
      %p244 = pneg %p35
      %p245 = scmp.lt.s32.totalorder %s17, 1
      %s246 = scalar_select %p245, %s17, 1
      %s247 = smul.addr %s246, 3
      %s248 = smul.addr %s247, 8
      %s249 = scalar_lea.vmem %s1, %s248
      %p250 = pneg %p64
      %p251 = pneg %p61
      %p252 = pneg %p85
      %p253 = pneg %p82
      %p254 = scmp.lt.s32.totalorder %s17, 1
      %s255 = scalar_select %p254, %s17, 1
      %s256 = smul.addr %s255, 2
      %s257 = smul.addr %s256, 8
      %s258 = scalar_lea.vmem %s3, %s257
      %p259 = pneg %p111
      %p260 = pneg %p108
      %p261 = pneg %p132
      %p262 = pneg %p129
      %p263 = pneg %p153
      %p264 = pneg %p150
      %p265 = pneg %p179
      %p266 = pneg %p176
      %p267 = scmp.lt.s32.totalorder %s17, 1
      %s268 = scalar_select %p267, %s17, 1
      %s269 = smul.addr %s268, 3
      %s270 = smul.addr %s269, 4
      %s271 = scalar_lea.vmem %s6, %s270
      %p272 = scmp.lt.s32.totalorder %s17, 1
      %s273 = scalar_select %p272, %s17, 1
      %s274 = smul.addr %s273, 4
      %s275 = smul.addr %s274, 4
      %s276 = scalar_lea.vmem %s0, %s275
      %p277 = scmp.lt.s32.totalorder %s17, 1
      %s278 = scalar_select %p277, %s17, 1
      %s279 = smul.addr %s278, 3
      %s280 = smul.addr %s279, 8
      %s281 = scalar_lea.vmem %s1, %s280
      %p282 = scmp.lt.s32.totalorder %s17, 1
      %s283 = scalar_select %p282, %s17, 1
      %s284 = smul.addr %s283, 2
      %s285 = smul.addr %s284, 8
      %s286 = scalar_lea.vmem %s3, %s285
      %p287 = scmp.lt.s32.totalorder %s17, 1
      %s288 = scalar_select %p287, %s17, 1
      %s289 = smul.addr %s288, 3
      %s290 = smul.addr %s289, 4
      %s291 = scalar_lea.vmem %s6, %s290
      %v292 = vld [vmem:[%s276] sm:$0xff]
      %v293 = vld [vmem:[%s276 + $0x8] sm:$0xf]
      %v295 = vcombine.high %v292, %v292
      %297 = vst [vmem:[#allocation2] sm:$0xf] %v292
      %298 = vst [vmem:[#allocation2 + $0x8] sm:$0xf] %v295
      %299 = vst [vmem:[#allocation2 + $0x10] sm:$0xf] %v293
      %v300 = vld [vmem:[%s276] sm:$0xff]
      %v301 = vld [vmem:[%s276 + $0x8] sm:$0xff]
      %v304 = vcombine.low %v300, %v300
      %v305 = vcombine.low %v301, %v301
      %306 = vrot.lane.b32.xlu0 %v304, 127
      %v307 = vpop.permute.xlu0 %306
      %308 = vrot.lane.b32.xlu0 %v300, 127
      %v309 = vpop.permute.xlu0 %308
      %310 = vrot.lane.b32.xlu0 %v305, 127
      %v311 = vpop.permute.xlu0 %310
      %312 = vrot.lane.b32.xlu0 %v301, 127
      %v313 = vpop.permute.xlu0 %312
      %vm314 = vcmask 1039360
      %v315 = vsel %vm314, %v307, %v309
      %v316 = vsel %vm314, %v309, %v311
      %v317 = vsel %vm314, %v311, %v313
      %321 = vst [vmem:[#allocation2] sm:$0xf0] %v315
      %322 = vst [vmem:[#allocation2 + $0x8] sm:$0xf0] %v316
      %323 = vst [vmem:[#allocation2 + $0x10] sm:$0xf0] %v317
      %v324 = vld [vmem:[%s276] sm:$0xff]
      %v325 = vld [vmem:[%s276 + $0x8] sm:$0xff]
      %v328 = vcombine.high %v324, %v324
      %v329 = vcombine.high %v325, %v325
      %330 = vrot.lane.b32.xlu0 %v324, 126
      %v331 = vpop.permute.xlu0 %330
      %332 = vrot.lane.b32.xlu0 %v328, 126
      %v333 = vpop.permute.xlu0 %332
      %334 = vrot.lane.b32.xlu0 %v325, 126
      %v335 = vpop.permute.xlu0 %334
      %336 = vrot.lane.b32.xlu0 %v329, 126
      %v337 = vpop.permute.xlu0 %336
      %vm338 = vcmask 1031168
      %v339 = vsel %vm338, %v331, %v333
      %v340 = vsel %vm338, %v333, %v335
      %v341 = vsel %vm338, %v335, %v337
      %345 = vst [vmem:[#allocation2 + $0x18] sm:$0xf] %v339
      %346 = vst [vmem:[#allocation2 + $0x20] sm:$0xf] %v340
      %347 = vst [vmem:[#allocation2 + $0x28] sm:$0xf] %v341
      %v348 = vld [vmem:[%s276] sm:$0xff]
      %v349 = vld [vmem:[%s276 + $0x8] sm:$0xff]
      %v352 = vcombine.low %v348, %v348
      %v353 = vcombine.low %v349, %v349
      %354 = vrot.lane.b32.xlu0 %v352, 110
      %v355 = vpop.permute.xlu0 %354
      %356 = vrot.lane.b32.xlu0 %v348, 110
      %v357 = vpop.permute.xlu0 %356
      %358 = vrot.lane.b32.xlu0 %v353, 110
      %v359 = vpop.permute.xlu0 %358
      %360 = vrot.lane.b32.xlu0 %v349, 110
      %v361 = vpop.permute.xlu0 %360
      %vm362 = vcmask 900096
      %v363 = vsel %vm362, %v355, %v357
      %v364 = vsel %vm362, %v357, %v359
      %v365 = vsel %vm362, %v359, %v361
      %369 = vst [vmem:[#allocation2 + $0x18] sm:$0xf0] %v363
      %370 = vst [vmem:[#allocation2 + $0x20] sm:$0xf0] %v364
      %371 = vst [vmem:[#allocation2 + $0x28] sm:$0xf0] %v365
      %v372 = vld [vmem:[%s276] sm:$0xff]
      %v373 = vld [vmem:[%s276 + $0x8] sm:$0xff]
      %v376 = vcombine.high %v372, %v372
      %v377 = vcombine.high %v373, %v373
      %378 = vrot.lane.b32.xlu0 %v372, 109
      %v379 = vpop.permute.xlu0 %378
      %380 = vrot.lane.b32.xlu0 %v376, 109
      %v381 = vpop.permute.xlu0 %380
      %382 = vrot.lane.b32.xlu0 %v373, 109
      %v383 = vpop.permute.xlu0 %382
      %384 = vrot.lane.b32.xlu0 %v377, 109
      %v385 = vpop.permute.xlu0 %384
      %vm386 = vcmask 891904
      %v387 = vsel %vm386, %v379, %v381
      %v388 = vsel %vm386, %v381, %v383
      %v389 = vsel %vm386, %v383, %v385
      %393 = vst [vmem:[#allocation2 + $0x30] sm:$0xf] %v387
      %394 = vst [vmem:[#allocation2 + $0x38] sm:$0xf] %v388
      %395 = vst [vmem:[#allocation2 + $0x40] sm:$0xf] %v389
      %v396 = vld [vmem:[%s276] sm:$0xff]
      %v397 = vld [vmem:[%s276 + $0x8] sm:$0xff]
      %v400 = vcombine.low %v396, %v396
      %v401 = vcombine.low %v397, %v397
      %402 = vrot.lane.b32.xlu0 %v400, 108
      %v403 = vpop.permute.xlu0 %402
      %404 = vrot.lane.b32.xlu0 %v396, 108
      %v405 = vpop.permute.xlu0 %404
      %406 = vrot.lane.b32.xlu0 %v401, 108
      %v407 = vpop.permute.xlu0 %406
      %408 = vrot.lane.b32.xlu0 %v397, 108
      %v409 = vpop.permute.xlu0 %408
      %vm410 = vcmask 883712
      %v411 = vsel %vm410, %v403, %v405
      %v412 = vsel %vm410, %v405, %v407
      %v413 = vsel %vm410, %v407, %v409
      %417 = vst [vmem:[#allocation2 + $0x30] sm:$0xf0] %v411
      %418 = vst [vmem:[#allocation2 + $0x38] sm:$0xf0] %v412
      %419 = vst [vmem:[#allocation2 + $0x40] sm:$0xf0] %v413
      %v420 = vld [vmem:[%s276] sm:$0xff]
      %v421 = vld [vmem:[%s276 + $0x8] sm:$0xff]
      %v424 = vcombine.high %v420, %v420
      %v425 = vcombine.high %v421, %v421
      %426 = vrot.lane.b32.xlu0 %v420, 92
      %v427 = vpop.permute.xlu0 %426
      %428 = vrot.lane.b32.xlu0 %v424, 92
      %v429 = vpop.permute.xlu0 %428
      %430 = vrot.lane.b32.xlu0 %v421, 92
      %v431 = vpop.permute.xlu0 %430
      %432 = vrot.lane.b32.xlu0 %v425, 92
      %v433 = vpop.permute.xlu0 %432
      %vm434 = vcmask 752640
      %v435 = vsel %vm434, %v427, %v429
      %v436 = vsel %vm434, %v429, %v431
      %v437 = vsel %vm434, %v431, %v433
      %441 = vst [vmem:[#allocation2 + $0x48] sm:$0xf] %v435
      %442 = vst [vmem:[#allocation2 + $0x50] sm:$0xf] %v436
      %443 = vst [vmem:[#allocation2 + $0x58] sm:$0xf] %v437
      %v444 = vld [vmem:[%s276] sm:$0xff]
      %v445 = vld [vmem:[%s276 + $0x8] sm:$0xff]
      %v448 = vcombine.low %v444, %v444
      %v449 = vcombine.low %v445, %v445
      %450 = vrot.lane.b32.xlu0 %v448, 91
      %v451 = vpop.permute.xlu0 %450
      %452 = vrot.lane.b32.xlu0 %v444, 91
      %v453 = vpop.permute.xlu0 %452
      %454 = vrot.lane.b32.xlu0 %v449, 91
      %v455 = vpop.permute.xlu0 %454
      %456 = vrot.lane.b32.xlu0 %v445, 91
      %v457 = vpop.permute.xlu0 %456
      %vm458 = vcmask 744448
      %v459 = vsel %vm458, %v451, %v453
      %v460 = vsel %vm458, %v453, %v455
      %v461 = vsel %vm458, %v455, %v457
      %465 = vst [vmem:[#allocation2 + $0x48] sm:$0xf0] %v459
      %466 = vst [vmem:[#allocation2 + $0x50] sm:$0xf0] %v460
      %467 = vst [vmem:[#allocation2 + $0x58] sm:$0xf0] %v461
      %v468 = vld [vmem:[%s276] sm:$0xff]
      %v469 = vld [vmem:[%s276 + $0x8] sm:$0xff]
      %v472 = vcombine.high %v468, %v468
      %v473 = vcombine.high %v469, %v469
      %474 = vrot.lane.b32.xlu0 %v468, 90
      %v475 = vpop.permute.xlu0 %474
      %476 = vrot.lane.b32.xlu0 %v472, 90
      %v477 = vpop.permute.xlu0 %476
      %478 = vrot.lane.b32.xlu0 %v469, 90
      %v479 = vpop.permute.xlu0 %478
      %480 = vrot.lane.b32.xlu0 %v473, 90
      %v481 = vpop.permute.xlu0 %480
      %vm482 = vcmask 736256
      %v483 = vsel %vm482, %v475, %v477
      %v484 = vsel %vm482, %v477, %v479
      %v485 = vsel %vm482, %v479, %v481
      %489 = vst [vmem:[#allocation2 + $0x60] sm:$0xf] %v483
      %490 = vst [vmem:[#allocation2 + $0x68] sm:$0xf] %v484
      %491 = vst [vmem:[#allocation2 + $0x70] sm:$0xf] %v485
      %v492 = vld [vmem:[%s281] sm:$0xff]
      %v493 = vld [vmem:[%s281 + $0x8] sm:$0xff]
      %v494 = vld [vmem:[%s281 + $0x10] sm:$0xff]
      %v495 = vld [vmem:[#allocation2] sm:$0xff]
      %v496 = vld [vmem:[#allocation2 + $0x8] sm:$0xff]
      %v497 = vld [vmem:[#allocation2 + $0x10] sm:$0xff]
      %v498 = vld [vmem:[#allocation2 + $0x18] sm:$0xff]
      %v499 = vld [vmem:[#allocation2 + $0x20] sm:$0xff]
      %v500 = vld [vmem:[#allocation2 + $0x28] sm:$0xff]
      %v501 = vld [vmem:[#allocation2 + $0x30] sm:$0xff]
      %v502 = vld [vmem:[#allocation2 + $0x38] sm:$0xff]
      %v503 = vld [vmem:[#allocation2 + $0x40] sm:$0xff]
      %v504 = vld [vmem:[#allocation2 + $0x48] sm:$0xff]
      %v505 = vld [vmem:[#allocation2 + $0x50] sm:$0xff]
      %v506 = vld [vmem:[#allocation2 + $0x58] sm:$0xff]
      %v507 = vld [vmem:[#allocation2 + $0x60] sm:$0xf]
      %v508 = vld [vmem:[#allocation2 + $0x68] sm:$0xf]
      %v509 = vld [vmem:[#allocation2 + $0x70] sm:$0xf]
      %vm510 = vcmask 293888
      %v512 = vsel %vm510, %v492, 0
      %v515 = vsel %vm510, %v493, 0
      %v518 = vsel %vm510, %v494, 0
      %vm520 = vcmask 1043456
      %v522 = vsel %vm520, %v507, 0
      %v525 = vsel %vm520, %v508, 0
      %v528 = vsel %vm520, %v509, 0
      %530 = vmatprep.subr.mxu0 %v496
      %531 = vmatpush1.msra.mxu0 %v495
      %532 = vmatprep.subr.mxu0 %v499
      %533 = vmatpush1.msra.mxu0 %v498
      %534 = vmatprep.subr.mxu0 %v502
      %535 = vmatpush1.msra.mxu0 %v501
      %536 = vmatprep.subr.mxu0 %v505
      %537 = vmatpush1.msra.mxu0 %v504
      %538 = vmatprep.subr.mxu0 %v525
      %539 = vmatpush1.msra.mxu0 %v522
      %540 = vmatprep.subr.mxu0 0.0
      %541 = vmatpush1.msra.mxu0 0.0
      %542 = vmatprep.subr.mxu0 0.0
      %543 = vmatpush1.msra.mxu0 0.0
      %544 = vmatprep.subr.mxu0 0.0
      %545 = vmatpush1.msra.mxu0 0.0
      %546 = vmatprep.subr.mxu0 0.0
      %547 = vmatpush1.msra.mxu0 0.0
      %548 = vmatprep.subr.mxu0 0.0
      %549 = vmatpush1.msra.mxu0 0.0
      %550 = vmatprep.subr.mxu0 0.0
      %551 = vmatpush1.msra.mxu0 0.0
      %552 = vmatprep.subr.mxu0 0.0
      %553 = vmatpush1.msra.mxu0 0.0
      %554 = vmatprep.subr.mxu0 0.0
      %555 = vmatpush1.msra.mxu0 0.0
      %556 = vmatprep.subr.mxu0 0.0
      %557 = vmatpush1.msra.mxu0 0.0
      %558 = vmatprep.subr.mxu0 0.0
      %559 = vmatpush1.msra.mxu0 0.0
      %560 = vmatprep.subr.mxu0 0.0
      %561 = vmatpush1.msra.mxu0 0.0
      %562 = vmatprep.subr.mxu0 0.0
      %563 = vmatpush1.msra.mxu0 0.0
      %564 = vmatprep.subr.mxu0 0.0
      %565 = vmatpush1.msra.mxu0 0.0
      %566 = vmatprep.subr.mxu0 0.0
      %567 = vmatpush1.msra.mxu0 0.0
      %568 = vmatprep.subr.mxu0 0.0
      %569 = vmatpush1.msra.mxu0 0.0
      %570 = vmatprep.subr.mxu0 0.0
      %571 = vmatpush1.msra.mxu0 0.0
      %572 = vmatprep.subr.mxu0 0.0
      %573 = vmatpush1.msra.mxu0 0.0
      %574 = vmatprep.subr.mxu0 0.0
      %575 = vmatpush1.msra.mxu0 0.0
      %576 = vmatprep.subr.mxu0 0.0
      %577 = vmatpush1.msra.mxu0 0.0
      %578 = vmatprep.subr.mxu0 0.0
      %579 = vmatpush1.msra.mxu0 0.0
      %580 = vmatprep.subr.mxu0 0.0
      %581 = vmatpush1.msra.mxu0 0.0
      %582 = vmatprep.subr.mxu0 0.0
      %583 = vmatpush1.msra.mxu0 0.0
      %584 = vmatprep.subr.mxu0 0.0
      %585 = vmatpush1.msra.mxu0 0.0
      %586 = vmatprep.subr.mxu0 0.0
      %587 = vmatpush1.msra.mxu0 0.0
      %588 = vmatprep.subr.mxu0 0.0
      %589 = vmatpush1.msra.mxu0 0.0
      %590 = vmatprep.subr.mxu0 0.0
      %591 = vmatpush1.msra.mxu0 0.0
      %592 = vmatprep.subr.mxu0 0.0
      %593 = vmatpush1.msra.mxu0 0.0
      %594 = vmatprep.mubr.f32.mxu0 0.0
      %595 = vmatmul.mubr.f32.gmra.mrb[0].mxu0 %v512
      %v596 = vpop.f32.mrb[0].mxu0
      %v597 = vadd.f32 0.0, %v596
      %v598 = vpop.f32.mrb[0].mxu0
      %v599 = vadd.f32 0.0, %v598
      %600 = vmatprep.mubr.f32.mxu0 0.0
      %601 = vmatmul.mubr.f32.gmra.mrb[0].mxu0 %v515
      %v602 = vpop.f32.mrb[0].mxu0
      %v603 = vadd.f32 0.0, %v602
      %v604 = vpop.f32.mrb[0].mxu0
      %v605 = vadd.f32 0.0, %v604
      %606 = vmatprep.mubr.f32.mxu0 0.0
      %607 = vmatmul.mubr.f32.gmra.mrb[0].mxu0 %v518
      %v608 = vpop.f32.mrb[0].mxu0
      %v609 = vadd.f32 0.0, %v608
      %v610 = vpop.f32.mrb[0].mxu0
      %v611 = vadd.f32 0.0, %v610
      %612 = vdwg.mxu0
      %613 = vmatprep.subr.mxu0 0.0
      %614 = vmatpush1.msra.mxu0 %v497
      %615 = vmatprep.subr.mxu0 0.0
      %616 = vmatpush1.msra.mxu0 %v500
      %617 = vmatprep.subr.mxu0 0.0
      %618 = vmatpush1.msra.mxu0 %v503
      %619 = vmatprep.subr.mxu0 0.0
      %620 = vmatpush1.msra.mxu0 %v506
      %621 = vmatprep.subr.mxu0 0.0
      %622 = vmatpush1.msra.mxu0 %v528
      %623 = vmatprep.subr.mxu0 0.0
      %624 = vmatpush1.msra.mxu0 0.0
      %625 = vmatprep.subr.mxu0 0.0
      %626 = vmatpush1.msra.mxu0 0.0
      %627 = vmatprep.subr.mxu0 0.0
      %628 = vmatpush1.msra.mxu0 0.0
      %629 = vmatprep.subr.mxu0 0.0
      %630 = vmatpush1.msra.mxu0 0.0
      %631 = vmatprep.subr.mxu0 0.0
      %632 = vmatpush1.msra.mxu0 0.0
      %633 = vmatprep.subr.mxu0 0.0
      %634 = vmatpush1.msra.mxu0 0.0
      %635 = vmatprep.subr.mxu0 0.0
      %636 = vmatpush1.msra.mxu0 0.0
      %637 = vmatprep.subr.mxu0 0.0
      %638 = vmatpush1.msra.mxu0 0.0
      %639 = vmatprep.subr.mxu0 0.0
      %640 = vmatpush1.msra.mxu0 0.0
      %641 = vmatprep.subr.mxu0 0.0
      %642 = vmatpush1.msra.mxu0 0.0
      %643 = vmatprep.subr.mxu0 0.0
      %644 = vmatpush1.msra.mxu0 0.0
      %645 = vmatprep.subr.mxu0 0.0
      %646 = vmatpush1.msra.mxu0 0.0
      %647 = vmatprep.subr.mxu0 0.0
      %648 = vmatpush1.msra.mxu0 0.0
      %649 = vmatprep.subr.mxu0 0.0
      %650 = vmatpush1.msra.mxu0 0.0
      %651 = vmatprep.subr.mxu0 0.0
      %652 = vmatpush1.msra.mxu0 0.0
      %653 = vmatprep.subr.mxu0 0.0
      %654 = vmatpush1.msra.mxu0 0.0
      %655 = vmatprep.subr.mxu0 0.0
      %656 = vmatpush1.msra.mxu0 0.0
      %657 = vmatprep.subr.mxu0 0.0
      %658 = vmatpush1.msra.mxu0 0.0
      %659 = vmatprep.subr.mxu0 0.0
      %660 = vmatpush1.msra.mxu0 0.0
      %661 = vmatprep.subr.mxu0 0.0
      %662 = vmatpush1.msra.mxu0 0.0
      %663 = vmatprep.subr.mxu0 0.0
      %664 = vmatpush1.msra.mxu0 0.0
      %665 = vmatprep.subr.mxu0 0.0
      %666 = vmatpush1.msra.mxu0 0.0
      %667 = vmatprep.subr.mxu0 0.0
      %668 = vmatpush1.msra.mxu0 0.0
      %669 = vmatprep.subr.mxu0 0.0
      %670 = vmatpush1.msra.mxu0 0.0
      %671 = vmatprep.subr.mxu0 0.0
      %672 = vmatpush1.msra.mxu0 0.0
      %673 = vmatprep.subr.mxu0 0.0
      %674 = vmatpush1.msra.mxu0 0.0
      %675 = vmatprep.subr.mxu0 0.0
      %676 = vmatpush1.msra.mxu0 0.0
      %677 = vmatprep.mubr.f32.mxu0 0.0
      %678 = vmatmul.mubr.f32.gmra.mrb[0].mxu0 %v512
      %v679 = vpop.f32.mrb[0].mxu0
      %v680 = vadd.f32 0.0, %v679
      %v681 = vpop.f32.mrb[0].mxu0
      %682 = vmatprep.mubr.f32.mxu0 0.0
      %683 = vmatmul.mubr.f32.gmra.mrb[0].mxu0 %v515
      %v684 = vpop.f32.mrb[0].mxu0
      %v685 = vadd.f32 0.0, %v684
      %v686 = vpop.f32.mrb[0].mxu0
      %687 = vmatprep.mubr.f32.mxu0 0.0
      %688 = vmatmul.mubr.f32.gmra.mrb[0].mxu0 %v518
      %v689 = vpop.f32.mrb[0].mxu0
      %v690 = vadd.f32 0.0, %v689
      %v691 = vpop.f32.mrb[0].mxu0
      %692 = vdwg.mxu0
      %693 = vst [vmem:[#allocation3] sm:$0xff] %v597
      %694 = vst [vmem:[#allocation3 + $0x8] sm:$0xff] %v599
      %695 = vst [vmem:[#allocation3 + $0x10] sm:$0xff] %v680
      %696 = vst [vmem:[#allocation3 + $0x18] sm:$0xff] %v603
      %697 = vst [vmem:[#allocation3 + $0x20] sm:$0xff] %v605
      %698 = vst [vmem:[#allocation3 + $0x28] sm:$0xff] %v685
      %699 = vst [vmem:[#allocation3 + $0x30] sm:$0xff] %v609
      %700 = vst [vmem:[#allocation3 + $0x38] sm:$0xff] %v611
      %701 = vst [vmem:[#allocation3 + $0x40] sm:$0xff] %v690
      %v702 = vld [vmem:[#allocation3] sm:$0xff]
      %v703 = vld [vmem:[#allocation3 + $0x8] sm:$0xff]
      %v704 = vld [vmem:[#allocation3 + $0x10] sm:$0xff]
      %v705 = vld [vmem:[%s2] sm:$0xff]
      %707 = vset.pattern.permute.xlu0 0
      %708 = vperm.xlu0 %707, %v705
      %v709 = vpop.permute.xlu0 %708
      %v711 = vadd.f32 %v702, %v709
      %v712 = vadd.f32 %v703, %v709
      %v713 = vadd.f32 %v704, %v709
      %v717 = vrot.slane %v711, 7
      %v718 = vrot.slane %v712, 7
      %v719 = vrot.slane %v713, 7
      %vm723 = vcmp.gt.f32.partialorder %v711, %v717
      %vm724 = vcmp.gt.f32.partialorder %v712, %v718
      %vm725 = vcmp.gt.f32.partialorder %v713, %v719
      %v726 = vsel %vm723, %v711, %v717
      %v727 = vsel %vm724, %v712, %v718
      %v728 = vsel %vm725, %v713, %v719
      %v729 = vsel %vm723, 1, 0
      %v730 = vsel %vm724, 1, 0
      %v731 = vsel %vm725, 1, 0
      %v735 = vrot.slane %v726, 7
      %v736 = vrot.slane %v727, 7
      %v737 = vrot.slane %v728, 7
      %vm741 = vcmp.gt.f32.partialorder %v711, %v735
      %vm742 = vcmp.gt.f32.partialorder %v712, %v736
      %vm743 = vcmp.gt.f32.partialorder %v713, %v737
      %v744 = vsel %vm741, %v711, %v735
      %v745 = vsel %vm742, %v712, %v736
      %v746 = vsel %vm743, %v713, %v737
      %v747 = vrot.slane %v729, 7
      %v748 = vrot.slane %v730, 7
      %v749 = vrot.slane %v731, 7
      %v750 = vsel %vm741, 2, %v747
      %v751 = vsel %vm742, 2, %v748
      %v752 = vsel %vm743, 2, %v749
      %v756 = vrot.slane %v744, 7
      %v757 = vrot.slane %v745, 7
      %v758 = vrot.slane %v746, 7
      %vm762 = vcmp.gt.f32.partialorder %v711, %v756
      %vm763 = vcmp.gt.f32.partialorder %v712, %v757
      %vm764 = vcmp.gt.f32.partialorder %v713, %v758
      %v765 = vrot.slane %v750, 7
      %v766 = vrot.slane %v751, 7
      %v767 = vrot.slane %v752, 7
      %v768 = vsel %vm762, 3, %v765
      %v769 = vsel %vm763, 3, %v766
      %v770 = vsel %vm764, 3, %v767
      %v771 = vlaneseq
      %v772 = vshrl.u32 %v771, 7
      %v773 = vlaneseq
      %v774 = vshrl.u32 %v773, 7
      %v775 = vsub.s32 3, %v774
      %v776 = vrot.slane %v768, %v775
      %v777 = vlaneseq
      %v778 = vshrl.u32 %v777, 7
      %v779 = vsub.s32 3, %v778
      %v780 = vrot.slane %v769, %v779
      %v781 = vlaneseq
      %v782 = vshrl.u32 %v781, 7
      %v783 = vsub.s32 3, %v782
      %v784 = vrot.slane %v770, %v783
      %vm785 = vcmp.eq.s32.totalorder %v772, %v776
      %vm786 = vcmp.eq.s32.totalorder %v772, %v780
      %vm787 = vcmp.eq.s32.totalorder %v772, %v784
      %v788 = vsel %vm785, 1, 0
      %v789 = vsel %vm786, 1, 0
      %v790 = vsel %vm787, 1, 0
      %v791 = vcvt.s32.f32 %v788
      %v792 = vcvt.s32.f32 %v789
      %v793 = vcvt.s32.f32 %v790
      %v794 = vlaneseq
      %v795 = vshrl.u32 %v794, 7
      %v796 = vsub.s32 7, %v795
      %v797 = vrot.slane %v768, %v796
      %v798 = vlaneseq
      %v799 = vshrl.u32 %v798, 7
      %v800 = vsub.s32 7, %v799
      %v801 = vrot.slane %v769, %v800
      %v802 = vlaneseq
      %v803 = vshrl.u32 %v802, 7
      %v804 = vsub.s32 7, %v803
      %v805 = vrot.slane %v770, %v804
      %vm806 = vcmp.eq.s32.totalorder %v772, %v797
      %vm807 = vcmp.eq.s32.totalorder %v772, %v801
      %vm808 = vcmp.eq.s32.totalorder %v772, %v805
      %v809 = vsel %vm806, 1, 0
      %v810 = vsel %vm807, 1, 0
      %v811 = vsel %vm808, 1, 0
      %v812 = vcvt.s32.f32 %v809
      %v813 = vcvt.s32.f32 %v810
      %v814 = vcvt.s32.f32 %v811
      %v815 = vld [vmem:[#allocation3 + $0x18] sm:$0xf]
      %v816 = vld [vmem:[#allocation3 + $0x20] sm:$0xf]
      %v817 = vld [vmem:[#allocation3 + $0x28] sm:$0xf]
      %vm818 = vcmp.gt.f32.partialorder %v815, 0.0
      %vm819 = vcmp.gt.f32.partialorder %v816, 0.0
      %vm820 = vcmp.gt.f32.partialorder %v817, 0.0
      %v821 = vmul.f32 %v815, 0.1
      %v822 = vmul.f32 %v816, 0.1
      %v823 = vmul.f32 %v817, 0.1
      %v824 = vsel %vm818, %v815, %v821
      %v825 = vsel %vm819, %v816, %v822
      %v826 = vsel %vm820, %v817, %v823
      %v827 = vlaneseq
      %v828 = vshrl.u32 %v827, 7
      %v829 = vsub.s32 0, %v828
      %v830 = vrot.slane %v791, %v829
      %v831 = vlaneseq
      %v832 = vshrl.u32 %v831, 7
      %v833 = vsub.s32 0, %v832
      %v834 = vrot.slane %v792, %v833
      %v835 = vlaneseq
      %v836 = vshrl.u32 %v835, 7
      %v837 = vsub.s32 0, %v836
      %v838 = vrot.slane %v793, %v837
      %v839 = vmul.f32 %v824, %v830
      %v840 = vmul.f32 %v825, %v834
      %v841 = vmul.f32 %v826, %v838
      %v842 = vadd.f32 %v839, 0.0
      %v843 = vadd.f32 %v840, 0.0
      %v844 = vadd.f32 %v841, 0.0
      %v845 = vld [vmem:[#allocation3 + $0x18] sm:$0xf0]
      %v846 = vld [vmem:[#allocation3 + $0x20] sm:$0xf0]
      %v847 = vld [vmem:[#allocation3 + $0x28] sm:$0xf0]
      %vm848 = vcmp.gt.f32.partialorder %v845, 0.0
      %vm849 = vcmp.gt.f32.partialorder %v846, 0.0
      %vm850 = vcmp.gt.f32.partialorder %v847, 0.0
      %v851 = vmul.f32 %v845, 0.1
      %v852 = vmul.f32 %v846, 0.1
      %v853 = vmul.f32 %v847, 0.1
      %v854 = vsel %vm848, %v845, %v851
      %v855 = vsel %vm849, %v846, %v852
      %v856 = vsel %vm850, %v847, %v853
      %v857 = vlaneseq
      %v858 = vshrl.u32 %v857, 7
      %v859 = vsub.s32 1, %v858
      %v860 = vrot.slane %v791, %v859
      %v861 = vlaneseq
      %v862 = vshrl.u32 %v861, 7
      %v863 = vsub.s32 1, %v862
      %v864 = vrot.slane %v792, %v863
      %v865 = vlaneseq
      %v866 = vshrl.u32 %v865, 7
      %v867 = vsub.s32 1, %v866
      %v868 = vrot.slane %v793, %v867
      %v869 = vmul.f32 %v854, %v860
      %v870 = vmul.f32 %v855, %v864
      %v871 = vmul.f32 %v856, %v868
      %v875 = vrot.slane %v869, 4
      %v876 = vrot.slane %v870, 4
      %v877 = vrot.slane %v871, 4
      %v881 = vadd.f32 %v842, %v875
      %v882 = vadd.f32 %v843, %v876
      %v883 = vadd.f32 %v844, %v877
      %v884 = vld [vmem:[#allocation3 + $0x30] sm:$0xf]
      %v885 = vld [vmem:[#allocation3 + $0x38] sm:$0xf]
      %v886 = vld [vmem:[#allocation3 + $0x40] sm:$0xf]
      %vm887 = vcmp.gt.f32.partialorder %v884, 0.0
      %vm888 = vcmp.gt.f32.partialorder %v885, 0.0
      %vm889 = vcmp.gt.f32.partialorder %v886, 0.0
      %v890 = vmul.f32 %v884, 0.1
      %v891 = vmul.f32 %v885, 0.1
      %v892 = vmul.f32 %v886, 0.1
      %v893 = vsel %vm887, %v884, %v890
      %v894 = vsel %vm888, %v885, %v891
      %v895 = vsel %vm889, %v886, %v892
      %v896 = vlaneseq
      %v897 = vshrl.u32 %v896, 7
      %v898 = vsub.s32 2, %v897
      %v899 = vrot.slane %v791, %v898
      %v900 = vlaneseq
      %v901 = vshrl.u32 %v900, 7
      %v902 = vsub.s32 2, %v901
      %v903 = vrot.slane %v792, %v902
      %v904 = vlaneseq
      %v905 = vshrl.u32 %v904, 7
      %v906 = vsub.s32 2, %v905
      %v907 = vrot.slane %v793, %v906
      %v908 = vmul.f32 %v893, %v899
      %v909 = vmul.f32 %v894, %v903
      %v910 = vmul.f32 %v895, %v907
      %v911 = vadd.f32 %v881, %v908
      %v912 = vadd.f32 %v882, %v909
      %v913 = vadd.f32 %v883, %v910
      %v914 = vld [vmem:[#allocation3 + $0x30] sm:$0xf0]
      %v915 = vld [vmem:[#allocation3 + $0x38] sm:$0xf0]
      %v916 = vld [vmem:[#allocation3 + $0x40] sm:$0xf0]
      %vm917 = vcmp.gt.f32.partialorder %v914, 0.0
      %vm918 = vcmp.gt.f32.partialorder %v915, 0.0
      %vm919 = vcmp.gt.f32.partialorder %v916, 0.0
      %v920 = vmul.f32 %v914, 0.1
      %v921 = vmul.f32 %v915, 0.1
      %v922 = vmul.f32 %v916, 0.1
      %v923 = vsel %vm917, %v914, %v920
      %v924 = vsel %vm918, %v915, %v921
      %v925 = vsel %vm919, %v916, %v922
      %v926 = vlaneseq
      %v927 = vshrl.u32 %v926, 7
      %v928 = vsub.s32 3, %v927
      %v929 = vrot.slane %v791, %v928
      %v930 = vlaneseq
      %v931 = vshrl.u32 %v930, 7
      %v932 = vsub.s32 3, %v931
      %v933 = vrot.slane %v792, %v932
      %v934 = vlaneseq
      %v935 = vshrl.u32 %v934, 7
      %v936 = vsub.s32 3, %v935
      %v937 = vrot.slane %v793, %v936
      %v938 = vmul.f32 %v923, %v929
      %v939 = vmul.f32 %v924, %v933
      %v940 = vmul.f32 %v925, %v937
      %v944 = vrot.slane %v938, 4
      %v945 = vrot.slane %v939, 4
      %v946 = vrot.slane %v940, 4
      %v950 = vadd.f32 %v911, %v944
      %v951 = vadd.f32 %v912, %v945
      %v952 = vadd.f32 %v913, %v946
      %v953 = vld [vmem:[%s4] sm:$0xf]
      %v954 = vld [vmem:[%s5] sm:$0xf]
      %v955 = vlaneseq
      %v956 = vshrl.u32 %v955, 7
      %v957 = vsub.s32 0, %v956
      %v958 = vrot.slane %v950, %v957
      %v959 = vlaneseq
      %v960 = vshrl.u32 %v959, 7
      %v961 = vsub.s32 0, %v960
      %v962 = vrot.slane %v951, %v961
      %v963 = vlaneseq
      %v964 = vshrl.u32 %v963, 7
      %v965 = vsub.s32 0, %v964
      %v966 = vrot.slane %v952, %v965
      %968 = vset.pattern.permute.xlu0 0
      %969 = vperm.xlu0 %968, %v953
      %v970 = vpop.permute.xlu0 %969
      %v972 = vmul.f32 %v958, %v970
      %v973 = vmul.f32 %v962, %v970
      %v974 = vmul.f32 %v966, %v970
      %976 = vset.pattern.permute.xlu0 0
      %977 = vperm.xlu0 %976, %v954
      %v978 = vpop.permute.xlu0 %977
      %v980 = vadd.f32 %v978, %v972
      %v981 = vadd.f32 %v978, %v973
      %v982 = vadd.f32 %v978, %v974
      %v983 = vlaneseq
      %v984 = vshrl.u32 %v983, 7
      %v985 = vsub.s32 1, %v984
      %v986 = vrot.slane %v950, %v985
      %v987 = vlaneseq
      %v988 = vshrl.u32 %v987, 7
      %v989 = vsub.s32 1, %v988
      %v990 = vrot.slane %v951, %v989
      %v991 = vlaneseq
      %v992 = vshrl.u32 %v991, 7
      %v993 = vsub.s32 1, %v992
      %v994 = vrot.slane %v952, %v993
      %995 = vset.pattern.permute.xlu0 1
      %996 = vperm.xlu0 %995, %v953
      %v997 = vpop.permute.xlu0 %996
      %v999 = vmul.f32 %v986, %v997
      %v1000 = vmul.f32 %v990, %v997
      %v1001 = vmul.f32 %v994, %v997
      %v1002 = vadd.f32 %v980, %v999
      %v1003 = vadd.f32 %v981, %v1000
      %v1004 = vadd.f32 %v982, %v1001
      %v1005 = vlaneseq
      %v1006 = vshrl.u32 %v1005, 7
      %v1007 = vsub.s32 2, %v1006
      %v1008 = vrot.slane %v950, %v1007
      %v1009 = vlaneseq
      %v1010 = vshrl.u32 %v1009, 7
      %v1011 = vsub.s32 2, %v1010
      %v1012 = vrot.slane %v951, %v1011
      %v1013 = vlaneseq
      %v1014 = vshrl.u32 %v1013, 7
      %v1015 = vsub.s32 2, %v1014
      %v1016 = vrot.slane %v952, %v1015
      %1017 = vset.pattern.permute.xlu0 2
      %1018 = vperm.xlu0 %1017, %v953
      %v1019 = vpop.permute.xlu0 %1018
      %v1021 = vmul.f32 %v1008, %v1019
      %v1022 = vmul.f32 %v1012, %v1019
      %v1023 = vmul.f32 %v1016, %v1019
      %v1024 = vadd.f32 %v1002, %v1021
      %v1025 = vadd.f32 %v1003, %v1022
      %v1026 = vadd.f32 %v1004, %v1023
      %v1027 = vlaneseq
      %v1028 = vshrl.u32 %v1027, 7
      %v1029 = vsub.s32 3, %v1028
      %v1030 = vrot.slane %v950, %v1029
      %v1031 = vlaneseq
      %v1032 = vshrl.u32 %v1031, 7
      %v1033 = vsub.s32 3, %v1032
      %v1034 = vrot.slane %v951, %v1033
      %v1035 = vlaneseq
      %v1036 = vshrl.u32 %v1035, 7
      %v1037 = vsub.s32 3, %v1036
      %v1038 = vrot.slane %v952, %v1037
      %1039 = vset.pattern.permute.xlu0 3
      %1040 = vperm.xlu0 %1039, %v953
      %v1041 = vpop.permute.xlu0 %1040
      %v1043 = vmul.f32 %v1030, %v1041
      %v1044 = vmul.f32 %v1034, %v1041
      %v1045 = vmul.f32 %v1038, %v1041
      %v1046 = vadd.f32 %v1024, %v1043
      %v1047 = vadd.f32 %v1025, %v1044
      %v1048 = vadd.f32 %v1026, %v1045
      %v1049 = vld [vmem:[%s286] sm:$0xf]
      %1051 = vset.pattern.permute.xlu0 0
      %1052 = vperm.xlu0 %1051, %v1049
      %v1053 = vpop.permute.xlu0 %1052
      %v1055 = vlaneseq
      %v1056 = vshrl.u32 %v1055, 7
      %v1057 = vsub.s32 0, %v1056
      %v1058 = vrot.slane %v812, %v1057
      %v1059 = vlaneseq
      %v1060 = vshrl.u32 %v1059, 7
      %v1061 = vsub.s32 0, %v1060
      %v1062 = vrot.slane %v813, %v1061
      %v1063 = vlaneseq
      %v1064 = vshrl.u32 %v1063, 7
      %v1065 = vsub.s32 0, %v1064
      %v1066 = vrot.slane %v814, %v1065
      %v1067 = vmul.f32 %v1053, %v1058
      %v1068 = vmul.f32 %v1053, %v1062
      %v1069 = vmul.f32 %v1053, %v1066
      %v1070 = vld [vmem:[%s286 + $0x4] sm:$0xf]
      %1072 = vset.pattern.permute.xlu0 0
      %1073 = vperm.xlu0 %1072, %v1070
      %v1074 = vpop.permute.xlu0 %1073
      %v1076 = vlaneseq
      %v1077 = vshrl.u32 %v1076, 7
      %v1078 = vsub.s32 1, %v1077
      %v1079 = vrot.slane %v812, %v1078
      %v1080 = vlaneseq
      %v1081 = vshrl.u32 %v1080, 7
      %v1082 = vsub.s32 1, %v1081
      %v1083 = vrot.slane %v813, %v1082
      %v1084 = vlaneseq
      %v1085 = vshrl.u32 %v1084, 7
      %v1086 = vsub.s32 1, %v1085
      %v1087 = vrot.slane %v814, %v1086
      %v1088 = vmul.f32 %v1074, %v1079
      %v1089 = vmul.f32 %v1074, %v1083
      %v1090 = vmul.f32 %v1074, %v1087
      %v1091 = vadd.f32 %v1067, %v1088
      %v1092 = vadd.f32 %v1068, %v1089
      %v1093 = vadd.f32 %v1069, %v1090
      %v1094 = vld [vmem:[%s286 + $0x8] sm:$0xf]
      %1096 = vset.pattern.permute.xlu0 0
      %1097 = vperm.xlu0 %1096, %v1094
      %v1098 = vpop.permute.xlu0 %1097
      %v1100 = vlaneseq
      %v1101 = vshrl.u32 %v1100, 7
      %v1102 = vsub.s32 2, %v1101
      %v1103 = vrot.slane %v812, %v1102
      %v1104 = vlaneseq
      %v1105 = vshrl.u32 %v1104, 7
      %v1106 = vsub.s32 2, %v1105
      %v1107 = vrot.slane %v813, %v1106
      %v1108 = vlaneseq
      %v1109 = vshrl.u32 %v1108, 7
      %v1110 = vsub.s32 2, %v1109
      %v1111 = vrot.slane %v814, %v1110
      %v1112 = vmul.f32 %v1098, %v1103
      %v1113 = vmul.f32 %v1098, %v1107
      %v1114 = vmul.f32 %v1098, %v1111
      %v1115 = vadd.f32 %v1091, %v1112
      %v1116 = vadd.f32 %v1092, %v1113
      %v1117 = vadd.f32 %v1093, %v1114
      %v1118 = vld [vmem:[%s286 + $0xc] sm:$0xf]
      %1120 = vset.pattern.permute.xlu0 0
      %1121 = vperm.xlu0 %1120, %v1118
      %v1122 = vpop.permute.xlu0 %1121
      %v1124 = vlaneseq
      %v1125 = vshrl.u32 %v1124, 7
      %v1126 = vsub.s32 3, %v1125
      %v1127 = vrot.slane %v812, %v1126
      %v1128 = vlaneseq
      %v1129 = vshrl.u32 %v1128, 7
      %v1130 = vsub.s32 3, %v1129
      %v1131 = vrot.slane %v813, %v1130
      %v1132 = vlaneseq
      %v1133 = vshrl.u32 %v1132, 7
      %v1134 = vsub.s32 3, %v1133
      %v1135 = vrot.slane %v814, %v1134
      %v1136 = vmul.f32 %v1122, %v1127
      %v1137 = vmul.f32 %v1122, %v1131
      %v1138 = vmul.f32 %v1122, %v1135
      %v1139 = vadd.f32 %v1115, %v1136
      %v1140 = vadd.f32 %v1116, %v1137
      %v1141 = vadd.f32 %v1117, %v1138
      %v1142 = vld [vmem:[#allocation2 + $0x30] sm:$0xf]
      %v1143 = vld [vmem:[#allocation2 + $0x38] sm:$0xf]
      %v1144 = vld [vmem:[#allocation2 + $0x40] sm:$0xf]
      %v1145 = vmul.f32 %v1142, %v1139
      %v1146 = vmul.f32 %v1143, %v1140
      %v1147 = vmul.f32 %v1144, %v1141
      %v1148 = vadd.f32 %v1046, %v1145
      %v1149 = vadd.f32 %v1047, %v1146
      %v1150 = vadd.f32 %v1048, %v1147
      %v1153 = vcombine.low %v1148, %v1149
      %1155 = vst [vmem:[%s291] sm:$0xff] %v1153
      %1156 = vst [vmem:[%s291 + $0x8] sm:$0xf] %v1150
      %p1157 = scmp.lt.s32.totalorder %s17, 1
      %s1158 = scalar_select %p1157, %s17, 1
      %s1159 = smul.addr %s1158, 3
      %s1160 = smul.addr %s1159, 4
      %s1161 = scalar_lea.vmem %s6, %s1160
      // Predicated region
      $region45: #{da_conv_forward.1} parent=43 // pred_check
        %p1162 = pneg %p176
      $region46: #{da_conv_forward.1} parent=43 // pred_check_branch
        %1164 = sbr.rel (%p1162) target = $region48
      $region47: #{da_conv_forward.1} parent=43 // pred_region
        _
      $region48: #{da_conv_forward.1} parent=43 // pred_fallthru
        _
    $region44: #{da_conv_forward.1} parent=5 // pred_fallthru
      _
    %p1165 = scmp.le.s32.totalorder 2, %s12
    // Predicated region
    $region49: #{da_conv_forward.1} parent=5 // pred_check
      %p1166 = pneg %p1165
    $region50: #{da_conv_forward.1} parent=5 // pred_check_branch
      %1168 = sbr.rel (%p1166) target = $region52
    $region51: #{da_conv_forward.1} parent=5 // pred_region
      %s1169 = ssub.s32 %s12, 2
      // Predicated region
      $region53: #{da_conv_forward.1} parent=51 // pred_check
        %p1170 = pneg %p182
      $region54: #{da_conv_forward.1} parent=51 // pred_check_branch
        %1172 = sbr.rel (%p1170) target = $region56
      $region55: #{da_conv_forward.1} parent=51 // pred_region
        %p1173 = scmp.lt.s32.totalorder %s18, 1
        %s1174 = scalar_select %p1173, %s18, 1
        %s1175 = smul.addr %s1174, 3
        %s1176 = smul.addr %s1175, 4
        %s1177 = scalar_lea.vmem %s6, %s1176
      $region56: #{da_conv_forward.1} parent=51 // pred_fallthru
        _
    $region52: #{da_conv_forward.1} parent=5 // pred_fallthru
      _
  $region6: #{da_conv_forward.1} parent=0 // loop_footer
    %s16 = sadd.s32 1, %s12
  $region7: #{da_conv_forward.1} parent=0 // loop_footer_branch
    %11 = sbr.rel target = $region3
  $region8: #{da_conv_forward.1} parent=0 // loop_exit
    _

</llo_original>
